<compile_context>
chip_gen: v6e
topology: v6e:2x2x1
jax: 0.10.0
libtpu: 0.0.40
codegen_flags: <defaults>
</compile_context>

<pallas_src>
import jax
import jax.numpy as jnp
from jax import lax
from jax.experimental import pallas as pl
from jax.experimental.pallas import tpu as pltpu


def _gru_kernel(x_ref, wih_ref, whh_ref, bih_ref, bhh_ref, out_ref, gi_scr):
    # x_ref:  (T*Bp, C) bf16, time-major flattened (row t*Bp + b == x[b, t, :])
    # wih_ref:(C, 3H)   bf16      whh_ref:(H, 3H) bf16
    # bih_ref/bhh_ref: (1, 3H) f32
    # out_ref:(Bp, H)             gi_scr: (T*Bp, 3H) f32 VMEM scratch
    Bp, H = out_ref.shape
    T = x_ref.shape[0] // Bp
    H3 = 3 * H

    # Hoisted input projection: one large MXU matmul over all timesteps,
    # f32 accumulation, b_ih folded in here (outside the serial chain).
    gi_scr[...] = (
        jnp.dot(x_ref[...], wih_ref[...], preferred_element_type=jnp.float32)
        + bih_ref[...]
    )

    whh = whh_ref[...]                               # loop-invariant (H, 3H) bf16
    bhh = jnp.broadcast_to(bhh_ref[...], (Bp, H3))   # hoist broadcast out of loop

    def step(t, h):
        start = pl.multiple_of(t * Bp, 8)            # Bp % 8 == 0 → aligned slice
        gi = gi_scr[pl.ds(start, Bp), :]             # (Bp, 3H) f32, VMEM-resident
        gh = jnp.dot(h.astype(jnp.bfloat16), whh,
                     preferred_element_type=jnp.float32) + bhh
        i_r, i_z, i_n = gi[:, 0:H], gi[:, H:2 * H], gi[:, 2 * H:H3]
        h_r, h_z, h_n = gh[:, 0:H], gh[:, H:2 * H], gh[:, 2 * H:H3]
        r = jax.nn.sigmoid(i_r + h_r)
        z = jax.nn.sigmoid(i_z + h_z)
        n = jnp.tanh(i_n + r * h_n)                  # PyTorch: tanh(i_n + r*(W_hn h + b_hn))
        return (1.0 - z) * n + z * h                 # f32 gate math throughout

    h_last = lax.fori_loop(0, T, step, jnp.zeros((Bp, H), jnp.float32),
                           unroll=True)
    out_ref[...] = h_last.astype(out_ref.dtype)


@jax.jit
def gru_last_output(x, w_ih, w_hh, b_ih, b_hh):
    """x: (B, T, C). w_ih: (3H, C), w_hh: (3H, H), b_ih/b_hh: (3H,).
    Returns (B, H) == out[:, -1, :] of a PyTorch single-layer GRU."""
    B, T, C = x.shape
    H = w_hh.shape[1]
    Bp = ((B + 7) // 8) * 8   # pad batch to full sublanes (aligned slices, full MXU rows)

    # Time-major flatten so the recurrence reads contiguous aligned (Bp, 3H)
    # slabs; cast matmul operands to bf16 (MXU-native), biases/accum in f32.
    x_tm = jnp.transpose(x, (1, 0, 2))                       # (T, B, C)
    if Bp != B:
        x_tm = jnp.pad(x_tm, ((0, 0), (0, Bp - B), (0, 0)))  # zero batch padding
    x_tm = x_tm.reshape(T * Bp, C).astype(jnp.bfloat16)
    wih_t = jnp.transpose(w_ih).astype(jnp.bfloat16)         # (C, 3H)
    whh_t = jnp.transpose(w_hh).astype(jnp.bfloat16)         # (H, 3H)
    bih = b_ih.reshape(1, 3 * H).astype(jnp.float32)
    bhh = b_hh.reshape(1, 3 * H).astype(jnp.float32)

    vmem = lambda: pl.BlockSpec(memory_space=pltpu.MemorySpace.VMEM)
    out_p = pl.pallas_call(
        _gru_kernel,
        out_shape=jax.ShapeDtypeStruct((Bp, H), x.dtype),
        in_specs=[vmem() for _ in range(5)],
        out_specs=vmem(),
        scratch_shapes=[pltpu.VMEM((T * Bp, 3 * H), jnp.float32)],
    )(x_tm, wih_t, whh_t, bih, bhh)
    return out_p[:B]


def _gru_reference(x, w_ih, w_hh, b_ih, b_hh):
    """Pure-JAX f32 reference of PyTorch nn.GRU forward (single layer)."""
    B, T, C = x.shape
    H = w_hh.shape[1]
    h = jnp.zeros((B, H), jnp.float32)
    for t in range(T):
        x_t = x[:, t, :].astype(jnp.float32)
        gi = x_t @ w_ih.T + b_ih
        gh = h @ w_hh.T + b_hh
        i_r, i_z, i_n = gi[:, :H], gi[:, H:2 * H], gi[:, 2 * H:]
        h_r, h_z, h_n = gh[:, :H], gh[:, H:2 * H], gh[:, 2 * H:]
        r = jax.nn.sigmoid(i_r + h_r)
        z = jax.nn.sigmoid(i_z + h_z)
        n = jnp.tanh(i_n + r * h_n)
        h = (1.0 - z) * n + z * h
    return h.astype(x.dtype)


if __name__ == "__main__":
    B, T, C, H = 2, 8, 128, 128  # in_channels=128, hidden_size=128 per module

    key = jax.random.PRNGKey(0)
    kx, k1, k2, k3, k4 = jax.random.split(key, 5)

    # PyTorch-style U(-1/sqrt(H), 1/sqrt(H)) init.
    bound = 1.0 / jnp.sqrt(jnp.float32(H))
    x = jax.random.normal(kx, (B, T, C), jnp.float32)
    w_ih = jax.random.uniform(k1, (3 * H, C), jnp.float32, -bound, bound)
    w_hh = jax.random.uniform(k2, (3 * H, H), jnp.float32, -bound, bound)
    b_ih = jax.random.uniform(k3, (3 * H,), jnp.float32, -bound, bound)
    b_hh = jax.random.uniform(k4, (3 * H,), jnp.float32, -bound, bound)

    out = jax.block_until_ready(gru_last_output(x, w_ih, w_hh, b_ih, b_hh))
    ref = _gru_reference(x, w_ih, w_hh, b_ih, b_hh)

    assert out.shape == (B, H)
    # bf16 MXU matmuls (f32 accumulation) vs pure-f32 reference.
    err = float(jnp.max(jnp.abs(out.astype(jnp.float32) - ref.astype(jnp.float32))))
    assert jnp.allclose(out, ref, atol=2e-2, rtol=2e-2), f"max abs err {err}"

    print("KERNEL_OK")
</pallas_src>

<mosaic_0001>
module attributes {stable_mosaic.version = 11 : i64} {
  func.func @_gru_kernel(%arg0: memref<64x128xbf16, #tpu.memory_space<vmem>>, %arg1: memref<128x384xbf16, #tpu.memory_space<vmem>>, %arg2: memref<128x384xbf16, #tpu.memory_space<vmem>>, %arg3: memref<1x384xf32, #tpu.memory_space<vmem>>, %arg4: memref<1x384xf32, #tpu.memory_space<vmem>>, %arg5: memref<8x128xf32, #tpu.memory_space<vmem>>, %arg6: memref<64x384xf32, #tpu.memory_space<vmem>>) attributes {dimension_semantics = [], scalar_prefetch = 0 : i64, scratch_operands = 1 : i64, tpu.core_type = #tpu.core_type<tc>} {
    %c0 = arith.constant 0 : index
    %c0_0 = arith.constant 0 : index
    %0 = vector.load %arg0[%c0, %c0_0] : memref<64x128xbf16, #tpu.memory_space<vmem>>, vector<64x128xbf16>
    %c0_1 = arith.constant 0 : index
    %c0_2 = arith.constant 0 : index
    %1 = vector.load %arg1[%c0_1, %c0_2] : memref<128x384xbf16, #tpu.memory_space<vmem>>, vector<128x384xbf16>
    %cst = arith.constant dense<0.000000e+00> : vector<64x384xf32>
    %2 = tpu.matmul %0, %1, %cst {dimension_numbers = #tpu.dot_dimension_numbers<[1], [0], [0], [1], [0, 0, 1, 1], [], []>} : vector<64x128xbf16>, vector<128x384xbf16>, vector<64x384xf32> -> vector<64x384xf32>
    %c0_3 = arith.constant 0 : index
    %c0_4 = arith.constant 0 : index
    %3 = vector.load %arg3[%c0_3, %c0_4] : memref<1x384xf32, #tpu.memory_space<vmem>>, vector<1x384xf32>
    %4 = vector.broadcast %3 : vector<1x384xf32> to vector<64x384xf32>
    %5 = arith.addf %2, %4 : vector<64x384xf32>
    %c0_5 = arith.constant 0 : index
    %c0_6 = arith.constant 0 : index
    %6 = vector.load %arg6[%c0_5, %c0_6] : memref<64x384xf32, #tpu.memory_space<vmem>>, vector<64x384xf32>
    tpu.vector_store %arg6[%c0_5, %c0_6], %5 {strides = array<i32>} : memref<64x384xf32, #tpu.memory_space<vmem>>, vector<64x384xf32>,
    %c0_7 = arith.constant 0 : index
    %c0_8 = arith.constant 0 : index
    %7 = vector.load %arg2[%c0_7, %c0_8] : memref<128x384xbf16, #tpu.memory_space<vmem>>, vector<128x384xbf16>
    %c0_9 = arith.constant 0 : index
    %c0_10 = arith.constant 0 : index
    %8 = vector.load %arg4[%c0_9, %c0_10] : memref<1x384xf32, #tpu.memory_space<vmem>>, vector<1x384xf32>
    %9 = vector.shape_cast %8 : vector<1x384xf32> to vector<1x384xf32>
    %10 = vector.broadcast %9 : vector<1x384xf32> to vector<8x384xf32>
    %cst_11 = arith.constant 0.000000e+00 : f32
    %11 = vector.broadcast %cst_11 : f32 to vector<8x128xf32>
    %c0_i32 = arith.constant 0 : i32
    %c8_i32 = arith.constant 8 : i32
    %12 = arith.muli %c0_i32, %c8_i32 : i32
    %13 = tpu.assume_multiple %12, 8 : i32
    %14 = arith.index_cast %13 : i32 to index
    %c0_12 = arith.constant 0 : index
    %15 = vector.load %arg6[%14, %c0_12] : memref<64x384xf32, #tpu.memory_space<vmem>>, vector<8x384xf32>
    %16 = arith.truncf %11 : vector<8x128xf32> to vector<8x128xbf16>
    %cst_13 = arith.constant dense<0.000000e+00> : vector<8x384xf32>
    %17 = tpu.matmul %16, %7, %cst_13 {dimension_numbers = #tpu.dot_dimension_numbers<[1], [0], [0], [1], [0, 0, 1, 1], [], []>} : vector<8x128xbf16>, vector<128x384xbf16>, vector<8x384xf32> -> vector<8x384xf32>
    %18 = arith.addf %17, %10 : vector<8x384xf32>
    %19 = vector.extract_strided_slice %15 {offsets = [0, 0], sizes = [8, 128], strides = [1, 1]} : vector<8x384xf32> to vector<8x128xf32>
    %20 = vector.extract_strided_slice %15 {offsets = [0, 128], sizes = [8, 128], strides = [1, 1]} : vector<8x384xf32> to vector<8x128xf32>
    %21 = vector.extract_strided_slice %15 {offsets = [0, 256], sizes = [8, 128], strides = [1, 1]} : vector<8x384xf32> to vector<8x128xf32>
    %22 = vector.extract_strided_slice %18 {offsets = [0, 0], sizes = [8, 128], strides = [1, 1]} : vector<8x384xf32> to vector<8x128xf32>
    %23 = vector.extract_strided_slice %18 {offsets = [0, 128], sizes = [8, 128], strides = [1, 1]} : vector<8x384xf32> to vector<8x128xf32>
    %24 = vector.extract_strided_slice %18 {offsets = [0, 256], sizes = [8, 128], strides = [1, 1]} : vector<8x384xf32> to vector<8x128xf32>
    %25 = arith.addf %19, %22 : vector<8x128xf32>
    %26 = arith.negf %25 : vector<8x128xf32>
    %27 = math.exp %26 : vector<8x128xf32>
    %cst_14 = arith.constant 1.000000e+00 : f32
    %28 = vector.broadcast %cst_14 : f32 to vector<8x128xf32>
    %29 = arith.addf %28, %27 : vector<8x128xf32>
    %30 = arith.divf %28, %29 : vector<8x128xf32>
    %31 = arith.addf %20, %23 : vector<8x128xf32>
    %32 = arith.negf %31 : vector<8x128xf32>
    %33 = math.exp %32 : vector<8x128xf32>
    %cst_15 = arith.constant 1.000000e+00 : f32
    %34 = vector.broadcast %cst_15 : f32 to vector<8x128xf32>
    %35 = arith.addf %34, %33 : vector<8x128xf32>
    %36 = arith.divf %34, %35 : vector<8x128xf32>
    %37 = arith.mulf %30, %24 : vector<8x128xf32>
    %38 = arith.addf %21, %37 : vector<8x128xf32>
    %39 = math.tanh %38 : vector<8x128xf32>
    %cst_16 = arith.constant 1.000000e+00 : f32
    %40 = vector.broadcast %cst_16 : f32 to vector<8x128xf32>
    %41 = arith.subf %40, %36 : vector<8x128xf32>
    %42 = arith.mulf %41, %39 : vector<8x128xf32>
    %43 = arith.mulf %36, %11 : vector<8x128xf32>
    %44 = arith.addf %42, %43 : vector<8x128xf32>
    %c1_i32 = arith.constant 1 : i32
    %c8_i32_17 = arith.constant 8 : i32
    %45 = arith.muli %c1_i32, %c8_i32_17 : i32
    %46 = tpu.assume_multiple %45, 8 : i32
    %47 = arith.index_cast %46 : i32 to index
    %c0_18 = arith.constant 0 : index
    %48 = vector.load %arg6[%47, %c0_18] : memref<64x384xf32, #tpu.memory_space<vmem>>, vector<8x384xf32>
    %49 = arith.truncf %44 : vector<8x128xf32> to vector<8x128xbf16>
    %cst_19 = arith.constant dense<0.000000e+00> : vector<8x384xf32>
    %50 = tpu.matmul %49, %7, %cst_19 {dimension_numbers = #tpu.dot_dimension_numbers<[1], [0], [0], [1], [0, 0, 1, 1], [], []>} : vector<8x128xbf16>, vector<128x384xbf16>, vector<8x384xf32> -> vector<8x384xf32>
    %51 = arith.addf %50, %10 : vector<8x384xf32>
    %52 = vector.extract_strided_slice %48 {offsets = [0, 0], sizes = [8, 128], strides = [1, 1]} : vector<8x384xf32> to vector<8x128xf32>
    %53 = vector.extract_strided_slice %48 {offsets = [0, 128], sizes = [8, 128], strides = [1, 1]} : vector<8x384xf32> to vector<8x128xf32>
    %54 = vector.extract_strided_slice %48 {offsets = [0, 256], sizes = [8, 128], strides = [1, 1]} : vector<8x384xf32> to vector<8x128xf32>
    %55 = vector.extract_strided_slice %51 {offsets = [0, 0], sizes = [8, 128], strides = [1, 1]} : vector<8x384xf32> to vector<8x128xf32>
    %56 = vector.extract_strided_slice %51 {offsets = [0, 128], sizes = [8, 128], strides = [1, 1]} : vector<8x384xf32> to vector<8x128xf32>
    %57 = vector.extract_strided_slice %51 {offsets = [0, 256], sizes = [8, 128], strides = [1, 1]} : vector<8x384xf32> to vector<8x128xf32>
    %58 = arith.addf %52, %55 : vector<8x128xf32>
    %59 = arith.negf %58 : vector<8x128xf32>
    %60 = math.exp %59 : vector<8x128xf32>
    %cst_20 = arith.constant 1.000000e+00 : f32
    %61 = vector.broadcast %cst_20 : f32 to vector<8x128xf32>
    %62 = arith.addf %61, %60 : vector<8x128xf32>
    %63 = arith.divf %61, %62 : vector<8x128xf32>
    %64 = arith.addf %53, %56 : vector<8x128xf32>
    %65 = arith.negf %64 : vector<8x128xf32>
    %66 = math.exp %65 : vector<8x128xf32>
    %cst_21 = arith.constant 1.000000e+00 : f32
    %67 = vector.broadcast %cst_21 : f32 to vector<8x128xf32>
    %68 = arith.addf %67, %66 : vector<8x128xf32>
    %69 = arith.divf %67, %68 : vector<8x128xf32>
    %70 = arith.mulf %63, %57 : vector<8x128xf32>
    %71 = arith.addf %54, %70 : vector<8x128xf32>
    %72 = math.tanh %71 : vector<8x128xf32>
    %cst_22 = arith.constant 1.000000e+00 : f32
    %73 = vector.broadcast %cst_22 : f32 to vector<8x128xf32>
    %74 = arith.subf %73, %69 : vector<8x128xf32>
    %75 = arith.mulf %74, %72 : vector<8x128xf32>
    %76 = arith.mulf %69, %44 : vector<8x128xf32>
    %77 = arith.addf %75, %76 : vector<8x128xf32>
    %c2_i32 = arith.constant 2 : i32
    %c8_i32_23 = arith.constant 8 : i32
    %78 = arith.muli %c2_i32, %c8_i32_23 : i32
    %79 = tpu.assume_multiple %78, 8 : i32
    %80 = arith.index_cast %79 : i32 to index
    %c0_24 = arith.constant 0 : index
    %81 = vector.load %arg6[%80, %c0_24] : memref<64x384xf32, #tpu.memory_space<vmem>>, vector<8x384xf32>
    %82 = arith.truncf %77 : vector<8x128xf32> to vector<8x128xbf16>
    %cst_25 = arith.constant dense<0.000000e+00> : vector<8x384xf32>
    %83 = tpu.matmul %82, %7, %cst_25 {dimension_numbers = #tpu.dot_dimension_numbers<[1], [0], [0], [1], [0, 0, 1, 1], [], []>} : vector<8x128xbf16>, vector<128x384xbf16>, vector<8x384xf32> -> vector<8x384xf32>
    %84 = arith.addf %83, %10 : vector<8x384xf32>
    %85 = vector.extract_strided_slice %81 {offsets = [0, 0], sizes = [8, 128], strides = [1, 1]} : vector<8x384xf32> to vector<8x128xf32>
    %86 = vector.extract_strided_slice %81 {offsets = [0, 128], sizes = [8, 128], strides = [1, 1]} : vector<8x384xf32> to vector<8x128xf32>
    %87 = vector.extract_strided_slice %81 {offsets = [0, 256], sizes = [8, 128], strides = [1, 1]} : vector<8x384xf32> to vector<8x128xf32>
    %88 = vector.extract_strided_slice %84 {offsets = [0, 0], sizes = [8, 128], strides = [1, 1]} : vector<8x384xf32> to vector<8x128xf32>
    %89 = vector.extract_strided_slice %84 {offsets = [0, 128], sizes = [8, 128], strides = [1, 1]} : vector<8x384xf32> to vector<8x128xf32>
    %90 = vector.extract_strided_slice %84 {offsets = [0, 256], sizes = [8, 128], strides = [1, 1]} : vector<8x384xf32> to vector<8x128xf32>
    %91 = arith.addf %85, %88 : vector<8x128xf32>
    %92 = arith.negf %91 : vector<8x128xf32>
    %93 = math.exp %92 : vector<8x128xf32>
    %cst_26 = arith.constant 1.000000e+00 : f32
    %94 = vector.broadcast %cst_26 : f32 to vector<8x128xf32>
    %95 = arith.addf %94, %93 : vector<8x128xf32>
    %96 = arith.divf %94, %95 : vector<8x128xf32>
    %97 = arith.addf %86, %89 : vector<8x128xf32>
    %98 = arith.negf %97 : vector<8x128xf32>
    %99 = math.exp %98 : vector<8x128xf32>
    %cst_27 = arith.constant 1.000000e+00 : f32
    %100 = vector.broadcast %cst_27 : f32 to vector<8x128xf32>
    %101 = arith.addf %100, %99 : vector<8x128xf32>
    %102 = arith.divf %100, %101 : vector<8x128xf32>
    %103 = arith.mulf %96, %90 : vector<8x128xf32>
    %104 = arith.addf %87, %103 : vector<8x128xf32>
    %105 = math.tanh %104 : vector<8x128xf32>
    %cst_28 = arith.constant 1.000000e+00 : f32
    %106 = vector.broadcast %cst_28 : f32 to vector<8x128xf32>
    %107 = arith.subf %106, %102 : vector<8x128xf32>
    %108 = arith.mulf %107, %105 : vector<8x128xf32>
    %109 = arith.mulf %102, %77 : vector<8x128xf32>
    %110 = arith.addf %108, %109 : vector<8x128xf32>
    %c3_i32 = arith.constant 3 : i32
    %c8_i32_29 = arith.constant 8 : i32
    %111 = arith.muli %c3_i32, %c8_i32_29 : i32
    %112 = tpu.assume_multiple %111, 8 : i32
    %113 = arith.index_cast %112 : i32 to index
    %c0_30 = arith.constant 0 : index
    %114 = vector.load %arg6[%113, %c0_30] : memref<64x384xf32, #tpu.memory_space<vmem>>, vector<8x384xf32>
    %115 = arith.truncf %110 : vector<8x128xf32> to vector<8x128xbf16>
    %cst_31 = arith.constant dense<0.000000e+00> : vector<8x384xf32>
    %116 = tpu.matmul %115, %7, %cst_31 {dimension_numbers = #tpu.dot_dimension_numbers<[1], [0], [0], [1], [0, 0, 1, 1], [], []>} : vector<8x128xbf16>, vector<128x384xbf16>, vector<8x384xf32> -> vector<8x384xf32>
    %117 = arith.addf %116, %10 : vector<8x384xf32>
    %118 = vector.extract_strided_slice %114 {offsets = [0, 0], sizes = [8, 128], strides = [1, 1]} : vector<8x384xf32> to vector<8x128xf32>
    %119 = vector.extract_strided_slice %114 {offsets = [0, 128], sizes = [8, 128], strides = [1, 1]} : vector<8x384xf32> to vector<8x128xf32>
    %120 = vector.extract_strided_slice %114 {offsets = [0, 256], sizes = [8, 128], strides = [1, 1]} : vector<8x384xf32> to vector<8x128xf32>
    %121 = vector.extract_strided_slice %117 {offsets = [0, 0], sizes = [8, 128], strides = [1, 1]} : vector<8x384xf32> to vector<8x128xf32>
    %122 = vector.extract_strided_slice %117 {offsets = [0, 128], sizes = [8, 128], strides = [1, 1]} : vector<8x384xf32> to vector<8x128xf32>
    %123 = vector.extract_strided_slice %117 {offsets = [0, 256], sizes = [8, 128], strides = [1, 1]} : vector<8x384xf32> to vector<8x128xf32>
    %124 = arith.addf %118, %121 : vector<8x128xf32>
    %125 = arith.negf %124 : vector<8x128xf32>
    %126 = math.exp %125 : vector<8x128xf32>
    %cst_32 = arith.constant 1.000000e+00 : f32
    %127 = vector.broadcast %cst_32 : f32 to vector<8x128xf32>
    %128 = arith.addf %127, %126 : vector<8x128xf32>
    %129 = arith.divf %127, %128 : vector<8x128xf32>
    %130 = arith.addf %119, %122 : vector<8x128xf32>
    %131 = arith.negf %130 : vector<8x128xf32>
    %132 = math.exp %131 : vector<8x128xf32>
    %cst_33 = arith.constant 1.000000e+00 : f32
    %133 = vector.broadcast %cst_33 : f32 to vector<8x128xf32>
    %134 = arith.addf %133, %132 : vector<8x128xf32>
    %135 = arith.divf %133, %134 : vector<8x128xf32>
    %136 = arith.mulf %129, %123 : vector<8x128xf32>
    %137 = arith.addf %120, %136 : vector<8x128xf32>
    %138 = math.tanh %137 : vector<8x128xf32>
    %cst_34 = arith.constant 1.000000e+00 : f32
    %139 = vector.broadcast %cst_34 : f32 to vector<8x128xf32>
    %140 = arith.subf %139, %135 : vector<8x128xf32>
    %141 = arith.mulf %140, %138 : vector<8x128xf32>
    %142 = arith.mulf %135, %110 : vector<8x128xf32>
    %143 = arith.addf %141, %142 : vector<8x128xf32>
    %c4_i32 = arith.constant 4 : i32
    %c8_i32_35 = arith.constant 8 : i32
    %144 = arith.muli %c4_i32, %c8_i32_35 : i32
    %145 = tpu.assume_multiple %144, 8 : i32
    %146 = arith.index_cast %145 : i32 to index
    %c0_36 = arith.constant 0 : index
    %147 = vector.load %arg6[%146, %c0_36] : memref<64x384xf32, #tpu.memory_space<vmem>>, vector<8x384xf32>
    %148 = arith.truncf %143 : vector<8x128xf32> to vector<8x128xbf16>
    %cst_37 = arith.constant dense<0.000000e+00> : vector<8x384xf32>
    %149 = tpu.matmul %148, %7, %cst_37 {dimension_numbers = #tpu.dot_dimension_numbers<[1], [0], [0], [1], [0, 0, 1, 1], [], []>} : vector<8x128xbf16>, vector<128x384xbf16>, vector<8x384xf32> -> vector<8x384xf32>
    %150 = arith.addf %149, %10 : vector<8x384xf32>
    %151 = vector.extract_strided_slice %147 {offsets = [0, 0], sizes = [8, 128], strides = [1, 1]} : vector<8x384xf32> to vector<8x128xf32>
    %152 = vector.extract_strided_slice %147 {offsets = [0, 128], sizes = [8, 128], strides = [1, 1]} : vector<8x384xf32> to vector<8x128xf32>
    %153 = vector.extract_strided_slice %147 {offsets = [0, 256], sizes = [8, 128], strides = [1, 1]} : vector<8x384xf32> to vector<8x128xf32>
    %154 = vector.extract_strided_slice %150 {offsets = [0, 0], sizes = [8, 128], strides = [1, 1]} : vector<8x384xf32> to vector<8x128xf32>
    %155 = vector.extract_strided_slice %150 {offsets = [0, 128], sizes = [8, 128], strides = [1, 1]} : vector<8x384xf32> to vector<8x128xf32>
    %156 = vector.extract_strided_slice %150 {offsets = [0, 256], sizes = [8, 128], strides = [1, 1]} : vector<8x384xf32> to vector<8x128xf32>
    %157 = arith.addf %151, %154 : vector<8x128xf32>
    %158 = arith.negf %157 : vector<8x128xf32>
    %159 = math.exp %158 : vector<8x128xf32>
    %cst_38 = arith.constant 1.000000e+00 : f32
    %160 = vector.broadcast %cst_38 : f32 to vector<8x128xf32>
    %161 = arith.addf %160, %159 : vector<8x128xf32>
    %162 = arith.divf %160, %161 : vector<8x128xf32>
    %163 = arith.addf %152, %155 : vector<8x128xf32>
    %164 = arith.negf %163 : vector<8x128xf32>
    %165 = math.exp %164 : vector<8x128xf32>
    %cst_39 = arith.constant 1.000000e+00 : f32
    %166 = vector.broadcast %cst_39 : f32 to vector<8x128xf32>
    %167 = arith.addf %166, %165 : vector<8x128xf32>
    %168 = arith.divf %166, %167 : vector<8x128xf32>
    %169 = arith.mulf %162, %156 : vector<8x128xf32>
    %170 = arith.addf %153, %169 : vector<8x128xf32>
    %171 = math.tanh %170 : vector<8x128xf32>
    %cst_40 = arith.constant 1.000000e+00 : f32
    %172 = vector.broadcast %cst_40 : f32 to vector<8x128xf32>
    %173 = arith.subf %172, %168 : vector<8x128xf32>
    %174 = arith.mulf %173, %171 : vector<8x128xf32>
    %175 = arith.mulf %168, %143 : vector<8x128xf32>
    %176 = arith.addf %174, %175 : vector<8x128xf32>
    %c5_i32 = arith.constant 5 : i32
    %c8_i32_41 = arith.constant 8 : i32
    %177 = arith.muli %c5_i32, %c8_i32_41 : i32
    %178 = tpu.assume_multiple %177, 8 : i32
    %179 = arith.index_cast %178 : i32 to index
    %c0_42 = arith.constant 0 : index
    %180 = vector.load %arg6[%179, %c0_42] : memref<64x384xf32, #tpu.memory_space<vmem>>, vector<8x384xf32>
    %181 = arith.truncf %176 : vector<8x128xf32> to vector<8x128xbf16>
    %cst_43 = arith.constant dense<0.000000e+00> : vector<8x384xf32>
    %182 = tpu.matmul %181, %7, %cst_43 {dimension_numbers = #tpu.dot_dimension_numbers<[1], [0], [0], [1], [0, 0, 1, 1], [], []>} : vector<8x128xbf16>, vector<128x384xbf16>, vector<8x384xf32> -> vector<8x384xf32>
    %183 = arith.addf %182, %10 : vector<8x384xf32>
    %184 = vector.extract_strided_slice %180 {offsets = [0, 0], sizes = [8, 128], strides = [1, 1]} : vector<8x384xf32> to vector<8x128xf32>
    %185 = vector.extract_strided_slice %180 {offsets = [0, 128], sizes = [8, 128], strides = [1, 1]} : vector<8x384xf32> to vector<8x128xf32>
    %186 = vector.extract_strided_slice %180 {offsets = [0, 256], sizes = [8, 128], strides = [1, 1]} : vector<8x384xf32> to vector<8x128xf32>
    %187 = vector.extract_strided_slice %183 {offsets = [0, 0], sizes = [8, 128], strides = [1, 1]} : vector<8x384xf32> to vector<8x128xf32>
    %188 = vector.extract_strided_slice %183 {offsets = [0, 128], sizes = [8, 128], strides = [1, 1]} : vector<8x384xf32> to vector<8x128xf32>
    %189 = vector.extract_strided_slice %183 {offsets = [0, 256], sizes = [8, 128], strides = [1, 1]} : vector<8x384xf32> to vector<8x128xf32>
    %190 = arith.addf %184, %187 : vector<8x128xf32>
    %191 = arith.negf %190 : vector<8x128xf32>
    %192 = math.exp %191 : vector<8x128xf32>
    %cst_44 = arith.constant 1.000000e+00 : f32
    %193 = vector.broadcast %cst_44 : f32 to vector<8x128xf32>
    %194 = arith.addf %193, %192 : vector<8x128xf32>
    %195 = arith.divf %193, %194 : vector<8x128xf32>
    %196 = arith.addf %185, %188 : vector<8x128xf32>
    %197 = arith.negf %196 : vector<8x128xf32>
    %198 = math.exp %197 : vector<8x128xf32>
    %cst_45 = arith.constant 1.000000e+00 : f32
    %199 = vector.broadcast %cst_45 : f32 to vector<8x128xf32>
    %200 = arith.addf %199, %198 : vector<8x128xf32>
    %201 = arith.divf %199, %200 : vector<8x128xf32>
    %202 = arith.mulf %195, %189 : vector<8x128xf32>
    %203 = arith.addf %186, %202 : vector<8x128xf32>
    %204 = math.tanh %203 : vector<8x128xf32>
    %cst_46 = arith.constant 1.000000e+00 : f32
    %205 = vector.broadcast %cst_46 : f32 to vector<8x128xf32>
    %206 = arith.subf %205, %201 : vector<8x128xf32>
    %207 = arith.mulf %206, %204 : vector<8x128xf32>
    %208 = arith.mulf %201, %176 : vector<8x128xf32>
    %209 = arith.addf %207, %208 : vector<8x128xf32>
    %c6_i32 = arith.constant 6 : i32
    %c8_i32_47 = arith.constant 8 : i32
    %210 = arith.muli %c6_i32, %c8_i32_47 : i32
    %211 = tpu.assume_multiple %210, 8 : i32
    %212 = arith.index_cast %211 : i32 to index
    %c0_48 = arith.constant 0 : index
    %213 = vector.load %arg6[%212, %c0_48] : memref<64x384xf32, #tpu.memory_space<vmem>>, vector<8x384xf32>
    %214 = arith.truncf %209 : vector<8x128xf32> to vector<8x128xbf16>
    %cst_49 = arith.constant dense<0.000000e+00> : vector<8x384xf32>
    %215 = tpu.matmul %214, %7, %cst_49 {dimension_numbers = #tpu.dot_dimension_numbers<[1], [0], [0], [1], [0, 0, 1, 1], [], []>} : vector<8x128xbf16>, vector<128x384xbf16>, vector<8x384xf32> -> vector<8x384xf32>
    %216 = arith.addf %215, %10 : vector<8x384xf32>
    %217 = vector.extract_strided_slice %213 {offsets = [0, 0], sizes = [8, 128], strides = [1, 1]} : vector<8x384xf32> to vector<8x128xf32>
    %218 = vector.extract_strided_slice %213 {offsets = [0, 128], sizes = [8, 128], strides = [1, 1]} : vector<8x384xf32> to vector<8x128xf32>
    %219 = vector.extract_strided_slice %213 {offsets = [0, 256], sizes = [8, 128], strides = [1, 1]} : vector<8x384xf32> to vector<8x128xf32>
    %220 = vector.extract_strided_slice %216 {offsets = [0, 0], sizes = [8, 128], strides = [1, 1]} : vector<8x384xf32> to vector<8x128xf32>
    %221 = vector.extract_strided_slice %216 {offsets = [0, 128], sizes = [8, 128], strides = [1, 1]} : vector<8x384xf32> to vector<8x128xf32>
    %222 = vector.extract_strided_slice %216 {offsets = [0, 256], sizes = [8, 128], strides = [1, 1]} : vector<8x384xf32> to vector<8x128xf32>
    %223 = arith.addf %217, %220 : vector<8x128xf32>
    %224 = arith.negf %223 : vector<8x128xf32>
    %225 = math.exp %224 : vector<8x128xf32>
    %cst_50 = arith.constant 1.000000e+00 : f32
    %226 = vector.broadcast %cst_50 : f32 to vector<8x128xf32>
    %227 = arith.addf %226, %225 : vector<8x128xf32>
    %228 = arith.divf %226, %227 : vector<8x128xf32>
    %229 = arith.addf %218, %221 : vector<8x128xf32>
    %230 = arith.negf %229 : vector<8x128xf32>
    %231 = math.exp %230 : vector<8x128xf32>
    %cst_51 = arith.constant 1.000000e+00 : f32
    %232 = vector.broadcast %cst_51 : f32 to vector<8x128xf32>
    %233 = arith.addf %232, %231 : vector<8x128xf32>
    %234 = arith.divf %232, %233 : vector<8x128xf32>
    %235 = arith.mulf %228, %222 : vector<8x128xf32>
    %236 = arith.addf %219, %235 : vector<8x128xf32>
    %237 = math.tanh %236 : vector<8x128xf32>
    %cst_52 = arith.constant 1.000000e+00 : f32
    %238 = vector.broadcast %cst_52 : f32 to vector<8x128xf32>
    %239 = arith.subf %238, %234 : vector<8x128xf32>
    %240 = arith.mulf %239, %237 : vector<8x128xf32>
    %241 = arith.mulf %234, %209 : vector<8x128xf32>
    %242 = arith.addf %240, %241 : vector<8x128xf32>
    %c7_i32 = arith.constant 7 : i32
    %c8_i32_53 = arith.constant 8 : i32
    %243 = arith.muli %c7_i32, %c8_i32_53 : i32
    %244 = tpu.assume_multiple %243, 8 : i32
    %245 = arith.index_cast %244 : i32 to index
    %c0_54 = arith.constant 0 : index
    %246 = vector.load %arg6[%245, %c0_54] : memref<64x384xf32, #tpu.memory_space<vmem>>, vector<8x384xf32>
    %247 = arith.truncf %242 : vector<8x128xf32> to vector<8x128xbf16>
    %cst_55 = arith.constant dense<0.000000e+00> : vector<8x384xf32>
    %248 = tpu.matmul %247, %7, %cst_55 {dimension_numbers = #tpu.dot_dimension_numbers<[1], [0], [0], [1], [0, 0, 1, 1], [], []>} : vector<8x128xbf16>, vector<128x384xbf16>, vector<8x384xf32> -> vector<8x384xf32>
    %249 = arith.addf %248, %10 : vector<8x384xf32>
    %250 = vector.extract_strided_slice %246 {offsets = [0, 0], sizes = [8, 128], strides = [1, 1]} : vector<8x384xf32> to vector<8x128xf32>
    %251 = vector.extract_strided_slice %246 {offsets = [0, 128], sizes = [8, 128], strides = [1, 1]} : vector<8x384xf32> to vector<8x128xf32>
    %252 = vector.extract_strided_slice %246 {offsets = [0, 256], sizes = [8, 128], strides = [1, 1]} : vector<8x384xf32> to vector<8x128xf32>
    %253 = vector.extract_strided_slice %249 {offsets = [0, 0], sizes = [8, 128], strides = [1, 1]} : vector<8x384xf32> to vector<8x128xf32>
    %254 = vector.extract_strided_slice %249 {offsets = [0, 128], sizes = [8, 128], strides = [1, 1]} : vector<8x384xf32> to vector<8x128xf32>
    %255 = vector.extract_strided_slice %249 {offsets = [0, 256], sizes = [8, 128], strides = [1, 1]} : vector<8x384xf32> to vector<8x128xf32>
    %256 = arith.addf %250, %253 : vector<8x128xf32>
    %257 = arith.negf %256 : vector<8x128xf32>
    %258 = math.exp %257 : vector<8x128xf32>
    %cst_56 = arith.constant 1.000000e+00 : f32
    %259 = vector.broadcast %cst_56 : f32 to vector<8x128xf32>
    %260 = arith.addf %259, %258 : vector<8x128xf32>
    %261 = arith.divf %259, %260 : vector<8x128xf32>
    %262 = arith.addf %251, %254 : vector<8x128xf32>
    %263 = arith.negf %262 : vector<8x128xf32>
    %264 = math.exp %263 : vector<8x128xf32>
    %cst_57 = arith.constant 1.000000e+00 : f32
    %265 = vector.broadcast %cst_57 : f32 to vector<8x128xf32>
    %266 = arith.addf %265, %264 : vector<8x128xf32>
    %267 = arith.divf %265, %266 : vector<8x128xf32>
    %268 = arith.mulf %261, %255 : vector<8x128xf32>
    %269 = arith.addf %252, %268 : vector<8x128xf32>
    %270 = math.tanh %269 : vector<8x128xf32>
    %cst_58 = arith.constant 1.000000e+00 : f32
    %271 = vector.broadcast %cst_58 : f32 to vector<8x128xf32>
    %272 = arith.subf %271, %267 : vector<8x128xf32>
    %273 = arith.mulf %272, %270 : vector<8x128xf32>
    %274 = arith.mulf %267, %242 : vector<8x128xf32>
    %275 = arith.addf %273, %274 : vector<8x128xf32>
    %c8_i32_59 = arith.constant 8 : i32
    %c0_60 = arith.constant 0 : index
    %c0_61 = arith.constant 0 : index
    %276 = vector.load %arg5[%c0_60, %c0_61] : memref<8x128xf32, #tpu.memory_space<vmem>>, vector<8x128xf32>
    tpu.vector_store %arg5[%c0_60, %c0_61], %275 {strides = array<i32>} : memref<8x128xf32, #tpu.memory_space<vmem>>, vector<8x128xf32>,
    return
  }
}

</mosaic_0001>

<llo_original>
// kernel: gru_last_output.1
$region0: #{gru_last_output.1}
  #allocation0 [shape = 'u32[]', space=smem, size = 0x4, offset = 0x4, fixed_abs, tag = 'smem constant byte address 0x4 - core index']
  #allocation1 [shape = 'u32[144,128]{1,0:T(1,128)}', space=vmem, size = 0x12000, scoped, tag = 'internal scratch']
  #allocation2 [shape = 'f32[64,384]{1,0:T(8,128)}', space=vmem, size = 0x18000, scoped, tag = 'scratch operand']
  %s0 = inlined_call_operand.vmem [shape: bf16[64,128], index: 0, kind: input, shape index: {}]
  %s1 = inlined_call_operand.vmem [shape: bf16[128,384], index: 1, kind: input, shape index: {}]
  %s2 = inlined_call_operand.vmem [shape: bf16[128,384], index: 2, kind: input, shape index: {}]
  %s3 = inlined_call_operand.vmem [shape: f32[1,384], index: 3, kind: input, shape index: {}]
  %s4 = inlined_call_operand.vmem [shape: f32[1,384], index: 4, kind: input, shape index: {}]
  %s5 = inlined_call_operand.vmem [shape: f32[8,128], index: 5, kind: output, shape index: {}]
  %s6 = sld [smem:[#allocation0]]
  $region30: #{gru_last_output.1} parent=0
    _
  %s8 = ssub.s32 1, %s6
  %s9 = scalar_select 0, %s8, %s6
  // Predicated region
  $region2: #{gru_last_output.1} parent=0 // pred_check
    _
  $region3: #{gru_last_output.1} parent=0 // pred_check_branch
    %11 = sbr.rel (0) target = $region5
  $region4: #{gru_last_output.1} parent=0 // pred_region
    _
  $region5: #{gru_last_output.1} parent=0 // pred_fallthru
    _
  // Predicated region
  $region6: #{gru_last_output.1} parent=0 // pred_check
    _
  $region7: #{gru_last_output.1} parent=0 // pred_check_branch
    %13 = sbr.rel (0) target = $region9
  $region8: #{gru_last_output.1} parent=0 // pred_region
    _
  $region9: #{gru_last_output.1} parent=0 // pred_fallthru
    _
  // Predicated region
  $region10: #{gru_last_output.1} parent=0 // pred_check
    _
  $region11: #{gru_last_output.1} parent=0 // pred_check_branch
    %15 = sbr.rel (0) target = $region13
  $region12: #{gru_last_output.1} parent=0 // pred_region
    _
  $region13: #{gru_last_output.1} parent=0 // pred_fallthru
    _
  // Predicated region
  $region14: #{gru_last_output.1} parent=0 // pred_check
    _
  $region15: #{gru_last_output.1} parent=0 // pred_check_branch
    %17 = sbr.rel (0) target = $region17
  $region16: #{gru_last_output.1} parent=0 // pred_region
    _
  $region17: #{gru_last_output.1} parent=0 // pred_fallthru
    _
  // Predicated region
  $region18: #{gru_last_output.1} parent=0 // pred_check
    _
  $region19: #{gru_last_output.1} parent=0 // pred_check_branch
    %19 = sbr.rel (0) target = $region21
  $region20: #{gru_last_output.1} parent=0 // pred_region
    _
  $region21: #{gru_last_output.1} parent=0 // pred_fallthru
    _
  %v21 = vld [vmem:[%s0] sm:$0xf]
  %v22 = vld [vmem:[%s0 + $0x4] sm:$0xf]
  %v23 = vld [vmem:[%s0 + $0x8] sm:$0xf]
  %v24 = vld [vmem:[%s0 + $0xc] sm:$0xf]
  %v25 = vld [vmem:[%s0 + $0x10] sm:$0xf]
  %v26 = vld [vmem:[%s0 + $0x14] sm:$0xf]
  %v27 = vld [vmem:[%s0 + $0x18] sm:$0xf]
  %v28 = vld [vmem:[%s0 + $0x1c] sm:$0xf]
  %v29 = vld [vmem:[%s1] sm:$0xff]
  %v30 = vld [vmem:[%s1 + $0x8] sm:$0xf]
  %v31 = vld [vmem:[%s1 + $0xc] sm:$0xff]
  %v32 = vld [vmem:[%s1 + $0x14] sm:$0xf]
  %v33 = vld [vmem:[%s1 + $0x18] sm:$0xff]
  %v34 = vld [vmem:[%s1 + $0x20] sm:$0xf]
  %v35 = vld [vmem:[%s1 + $0x24] sm:$0xff]
  %v36 = vld [vmem:[%s1 + $0x2c] sm:$0xf]
  %v37 = vld [vmem:[%s1 + $0x30] sm:$0xff]
  %v38 = vld [vmem:[%s1 + $0x38] sm:$0xf]
  %v39 = vld [vmem:[%s1 + $0x3c] sm:$0xff]
  %v40 = vld [vmem:[%s1 + $0x44] sm:$0xf]
  %v41 = vld [vmem:[%s1 + $0x48] sm:$0xff]
  %v42 = vld [vmem:[%s1 + $0x50] sm:$0xf]
  %v43 = vld [vmem:[%s1 + $0x54] sm:$0xff]
  %v44 = vld [vmem:[%s1 + $0x5c] sm:$0xf]
  %v45 = vld [vmem:[%s1 + $0x60] sm:$0xff]
  %v46 = vld [vmem:[%s1 + $0x68] sm:$0xf]
  %v47 = vld [vmem:[%s1 + $0x6c] sm:$0xff]
  %v48 = vld [vmem:[%s1 + $0x74] sm:$0xf]
  %v49 = vld [vmem:[%s1 + $0x78] sm:$0xff]
  %v50 = vld [vmem:[%s1 + $0x80] sm:$0xf]
  %v51 = vld [vmem:[%s1 + $0x84] sm:$0xff]
  %v52 = vld [vmem:[%s1 + $0x8c] sm:$0xf]
  %v53 = vld [vmem:[%s1 + $0x90] sm:$0xff]
  %v54 = vld [vmem:[%s1 + $0x98] sm:$0xf]
  %v55 = vld [vmem:[%s1 + $0x9c] sm:$0xff]
  %v56 = vld [vmem:[%s1 + $0xa4] sm:$0xf]
  %v57 = vld [vmem:[%s1 + $0xa8] sm:$0xff]
  %v58 = vld [vmem:[%s1 + $0xb0] sm:$0xf]
  %v59 = vld [vmem:[%s1 + $0xb4] sm:$0xff]
  %v60 = vld [vmem:[%s1 + $0xbc] sm:$0xf]
  %v61 = vld [vmem:[%s3] sm:$0x7]
  %v63 = vlaneseq
  %v64 = vshrl.u32 %v63, 7
  %v65 = vsub.s32 0, %v64
  %v66 = vrot.slane %v61, %v65
  %v67 = vlaneseq
  %v68 = vshrl.u32 %v67, 7
  %v69 = vsub.s32 1, %v68
  %v70 = vrot.slane %v61, %v69
  %v71 = vlaneseq
  %v72 = vshrl.u32 %v71, 7
  %v73 = vsub.s32 2, %v72
  %v74 = vrot.slane %v61, %v73
  %v86 = vunpack.c.l.b16 %v21
  %v87 = vunpack.c.l.b16 %v22
  %v88 = vunpack.c.l.b16 %v23
  %v89 = vunpack.c.l.b16 %v24
  %v90 = vunpack.c.l.b16 %v25
  %v91 = vunpack.c.l.b16 %v26
  %v92 = vunpack.c.l.b16 %v27
  %v93 = vunpack.c.l.b16 %v28
  %v94 = vpack.c.b16 %v87, %v86
  %v95 = vpack.c.b16 %v89, %v88
  %v96 = vpack.c.b16 %v91, %v90
  %v97 = vpack.c.b16 %v93, %v92
  %v134 = vunpack.c.l.b16 %v29
  %v135 = vunpack.c.h.b16 %v29
  %v136 = vunpack.c.l.b16 %v30
  %v137 = vunpack.c.l.b16 %v31
  %v138 = vunpack.c.h.b16 %v31
  %v139 = vunpack.c.l.b16 %v32
  %v140 = vunpack.c.l.b16 %v33
  %v141 = vunpack.c.h.b16 %v33
  %v142 = vunpack.c.l.b16 %v34
  %v143 = vunpack.c.l.b16 %v35
  %v144 = vunpack.c.h.b16 %v35
  %v145 = vunpack.c.l.b16 %v36
  %v146 = vunpack.c.l.b16 %v37
  %v147 = vunpack.c.h.b16 %v37
  %v148 = vunpack.c.l.b16 %v38
  %v149 = vunpack.c.l.b16 %v39
  %v150 = vunpack.c.h.b16 %v39
  %v151 = vunpack.c.l.b16 %v40
  %v152 = vunpack.c.l.b16 %v41
  %v153 = vunpack.c.h.b16 %v41
  %v154 = vunpack.c.l.b16 %v42
  %v155 = vunpack.c.l.b16 %v43
  %v156 = vunpack.c.h.b16 %v43
  %v157 = vunpack.c.l.b16 %v44
  %v158 = vunpack.c.l.b16 %v45
  %v159 = vunpack.c.h.b16 %v45
  %v160 = vunpack.c.l.b16 %v46
  %v161 = vunpack.c.l.b16 %v47
  %v162 = vunpack.c.h.b16 %v47
  %v163 = vunpack.c.l.b16 %v48
  %v164 = vunpack.c.l.b16 %v49
  %v165 = vunpack.c.h.b16 %v49
  %v166 = vunpack.c.l.b16 %v50
  %v167 = vunpack.c.l.b16 %v51
  %v168 = vunpack.c.h.b16 %v51
  %v169 = vunpack.c.l.b16 %v52
  %v170 = vunpack.c.l.b16 %v53
  %v171 = vunpack.c.h.b16 %v53
  %v172 = vunpack.c.l.b16 %v54
  %v173 = vunpack.c.l.b16 %v55
  %v174 = vunpack.c.h.b16 %v55
  %v175 = vunpack.c.l.b16 %v56
  %v176 = vunpack.c.l.b16 %v57
  %v177 = vunpack.c.h.b16 %v57
  %v178 = vunpack.c.l.b16 %v58
  %v179 = vunpack.c.l.b16 %v59
  %v180 = vunpack.c.h.b16 %v59
  %v181 = vunpack.c.l.b16 %v60
  %v182 = vpack.c.b16 %v137, %v134
  %v183 = vpack.c.b16 %v138, %v135
  %v184 = vpack.c.b16 %v139, %v136
  %v185 = vpack.c.b16 %v143, %v140
  %v186 = vpack.c.b16 %v144, %v141
  %v187 = vpack.c.b16 %v145, %v142
  %v188 = vpack.c.b16 %v149, %v146
  %v189 = vpack.c.b16 %v150, %v147
  %v190 = vpack.c.b16 %v151, %v148
  %v191 = vpack.c.b16 %v155, %v152
  %v192 = vpack.c.b16 %v156, %v153
  %v193 = vpack.c.b16 %v157, %v154
  %v194 = vpack.c.b16 %v161, %v158
  %v195 = vpack.c.b16 %v162, %v159
  %v196 = vpack.c.b16 %v163, %v160
  %v197 = vpack.c.b16 %v167, %v164
  %v198 = vpack.c.b16 %v168, %v165
  %v199 = vpack.c.b16 %v169, %v166
  %v200 = vpack.c.b16 %v173, %v170
  %v201 = vpack.c.b16 %v174, %v171
  %v202 = vpack.c.b16 %v175, %v172
  %v203 = vpack.c.b16 %v179, %v176
  %v204 = vpack.c.b16 %v180, %v177
  %v205 = vpack.c.b16 %v181, %v178
  %230 = vmatprep.subr.bf16.mxu0 %v204
  %231 = vmatpush1.bf16.msra.mxu0 %v203
  %232 = vmatprep.subr.bf16.mxu0 %v201
  %233 = vmatpush1.bf16.msra.mxu0 %v200
  %234 = vmatprep.subr.bf16.mxu0 %v198
  %235 = vmatpush1.bf16.msra.mxu0 %v197
  %236 = vmatprep.subr.bf16.mxu0 %v195
  %237 = vmatpush1.bf16.msra.mxu0 %v194
  %238 = vmatprep.subr.bf16.mxu0 %v192
  %239 = vmatpush1.bf16.msra.mxu0 %v191
  %240 = vmatprep.subr.bf16.mxu0 %v189
  %241 = vmatpush1.bf16.msra.mxu0 %v188
  %242 = vmatprep.subr.bf16.mxu0 %v186
  %243 = vmatpush1.bf16.msra.mxu0 %v185
  %244 = vmatprep.subr.bf16.mxu0 %v183
  %245 = vmatpush1.bf16.msra.mxu0 %v182
  %246 = vmatprep.subr.bf16.mxu0 0
  %247 = vmatpush2.bf16.msra.mxu0 0
  %248 = vmatprep.subr.bf16.mxu0 0
  %249 = vmatpush2.bf16.msra.mxu0 0
  %250 = vmatprep.subr.bf16.mxu0 0
  %251 = vmatpush2.bf16.msra.mxu0 0
  %252 = vmatprep.subr.bf16.mxu0 0
  %253 = vmatpush2.bf16.msra.mxu0 0
  %254 = vmatprep.subr.bf16.mxu0 0
  %255 = vmatpush2.bf16.msra.mxu0 0
  %256 = vmatprep.subr.bf16.mxu0 0
  %257 = vmatpush2.bf16.msra.mxu0 0
  %258 = vmatprep.subr.bf16.mxu0 0
  %259 = vmatpush2.bf16.msra.mxu0 0
  %260 = vmatprep.subr.bf16.mxu0 0
  %261 = vmatpush2.bf16.msra.mxu0 0
  %262 = vmatprep.mubr.bf16.mxu0 0
  %263 = vmatmul.mubr.bf16.gmra.mxu0 %v94
  %v264 = vpop.f32.mrf.mxu0
  %v265 = vadd.f32 %v66, %v264
  %v266 = vpop.f32.mrf.mxu0
  %v267 = vadd.f32 %v70, %v266
  %v268 = vpop.f32.mrf.mxu0
  %v269 = vadd.f32 %v66, %v268
  %v270 = vpop.f32.mrf.mxu0
  %v271 = vadd.f32 %v70, %v270
  %272 = vmatprep.mubr.bf16.mxu0 0
  %273 = vmatmul.mubr.bf16.gmra.mxu0 %v95
  %v274 = vpop.f32.mrf.mxu0
  %v275 = vadd.f32 %v66, %v274
  %v276 = vpop.f32.mrf.mxu0
  %v277 = vadd.f32 %v70, %v276
  %v278 = vpop.f32.mrf.mxu0
  %v279 = vadd.f32 %v66, %v278
  %v280 = vpop.f32.mrf.mxu0
  %v281 = vadd.f32 %v70, %v280
  %282 = vmatprep.mubr.bf16.mxu0 0
  %283 = vmatmul.mubr.bf16.gmra.mxu0 %v96
  %v284 = vpop.f32.mrf.mxu0
  %v285 = vadd.f32 %v66, %v284
  %v286 = vpop.f32.mrf.mxu0
  %v287 = vadd.f32 %v70, %v286
  %v288 = vpop.f32.mrf.mxu0
  %v289 = vadd.f32 %v66, %v288
  %v290 = vpop.f32.mrf.mxu0
  %v291 = vadd.f32 %v70, %v290
  %292 = vmatprep.mubr.bf16.mxu0 0
  %293 = vmatmul.mubr.bf16.gmra.mxu0 %v97
  %v294 = vpop.f32.mrf.mxu0
  %v295 = vadd.f32 %v66, %v294
  %v296 = vpop.f32.mrf.mxu0
  %v297 = vadd.f32 %v70, %v296
  %v298 = vpop.f32.mrf.mxu0
  %v299 = vadd.f32 %v66, %v298
  %v300 = vpop.f32.mrf.mxu0
  %v301 = vadd.f32 %v70, %v300
  %302 = vdwg.mxu0
  %303 = vmatprep.subr.bf16.mxu0 0
  %304 = vmatpush1.bf16.msra.mxu0 %v205
  %305 = vmatprep.subr.bf16.mxu0 0
  %306 = vmatpush1.bf16.msra.mxu0 %v202
  %307 = vmatprep.subr.bf16.mxu0 0
  %308 = vmatpush1.bf16.msra.mxu0 %v199
  %309 = vmatprep.subr.bf16.mxu0 0
  %310 = vmatpush1.bf16.msra.mxu0 %v196
  %311 = vmatprep.subr.bf16.mxu0 0
  %312 = vmatpush1.bf16.msra.mxu0 %v193
  %313 = vmatprep.subr.bf16.mxu0 0
  %314 = vmatpush1.bf16.msra.mxu0 %v190
  %315 = vmatprep.subr.bf16.mxu0 0
  %316 = vmatpush1.bf16.msra.mxu0 %v187
  %317 = vmatprep.subr.bf16.mxu0 0
  %318 = vmatpush1.bf16.msra.mxu0 %v184
  %319 = vmatprep.subr.bf16.mxu0 0
  %320 = vmatpush2.bf16.msra.mxu0 0
  %321 = vmatprep.subr.bf16.mxu0 0
  %322 = vmatpush2.bf16.msra.mxu0 0
  %323 = vmatprep.subr.bf16.mxu0 0
  %324 = vmatpush2.bf16.msra.mxu0 0
  %325 = vmatprep.subr.bf16.mxu0 0
  %326 = vmatpush2.bf16.msra.mxu0 0
  %327 = vmatprep.subr.bf16.mxu0 0
  %328 = vmatpush2.bf16.msra.mxu0 0
  %329 = vmatprep.subr.bf16.mxu0 0
  %330 = vmatpush2.bf16.msra.mxu0 0
  %331 = vmatprep.subr.bf16.mxu0 0
  %332 = vmatpush2.bf16.msra.mxu0 0
  %333 = vmatprep.subr.bf16.mxu0 0
  %334 = vmatpush2.bf16.msra.mxu0 0
  %335 = vmatprep.mubr.bf16.mxu0 0
  %336 = vmatmul.mubr.bf16.gmra.mxu0 %v94
  %v337 = vpop.f32.mrf.mxu0
  %v338 = vadd.f32 %v74, %v337
  %v339 = vpop.f32.mrf.mxu0
  %v340 = vpop.f32.mrf.mxu0
  %v341 = vadd.f32 %v74, %v340
  %v342 = vpop.f32.mrf.mxu0
  %343 = vmatprep.mubr.bf16.mxu0 0
  %344 = vmatmul.mubr.bf16.gmra.mxu0 %v95
  %v345 = vpop.f32.mrf.mxu0
  %v346 = vadd.f32 %v74, %v345
  %v347 = vpop.f32.mrf.mxu0
  %v348 = vpop.f32.mrf.mxu0
  %v349 = vadd.f32 %v74, %v348
  %v350 = vpop.f32.mrf.mxu0
  %351 = vmatprep.mubr.bf16.mxu0 0
  %352 = vmatmul.mubr.bf16.gmra.mxu0 %v96
  %v353 = vpop.f32.mrf.mxu0
  %v354 = vadd.f32 %v74, %v353
  %v355 = vpop.f32.mrf.mxu0
  %v356 = vpop.f32.mrf.mxu0
  %v357 = vadd.f32 %v74, %v356
  %v358 = vpop.f32.mrf.mxu0
  %359 = vmatprep.mubr.bf16.mxu0 0
  %360 = vmatmul.mubr.bf16.gmra.mxu0 %v97
  %v361 = vpop.f32.mrf.mxu0
  %v362 = vadd.f32 %v74, %v361
  %v363 = vpop.f32.mrf.mxu0
  %v364 = vpop.f32.mrf.mxu0
  %v365 = vadd.f32 %v74, %v364
  %v366 = vpop.f32.mrf.mxu0
  %367 = vdwg.mxu0
  %368 = vst [vmem:[#allocation2] sm:$0xff] %v265
  %369 = vst [vmem:[#allocation2 + $0x8] sm:$0xff] %v267
  %370 = vst [vmem:[#allocation2 + $0x10] sm:$0xff] %v338
  %371 = vst [vmem:[#allocation2 + $0x18] sm:$0xff] %v269
  %372 = vst [vmem:[#allocation2 + $0x20] sm:$0xff] %v271
  %373 = vst [vmem:[#allocation2 + $0x28] sm:$0xff] %v341
  %374 = vst [vmem:[#allocation2 + $0x30] sm:$0xff] %v275
  %375 = vst [vmem:[#allocation2 + $0x38] sm:$0xff] %v277
  %376 = vst [vmem:[#allocation2 + $0x40] sm:$0xff] %v346
  %377 = vst [vmem:[#allocation2 + $0x48] sm:$0xff] %v279
  %378 = vst [vmem:[#allocation2 + $0x50] sm:$0xff] %v281
  %379 = vst [vmem:[#allocation2 + $0x58] sm:$0xff] %v349
  %380 = vst [vmem:[#allocation2 + $0x60] sm:$0xff] %v285
  %381 = vst [vmem:[#allocation2 + $0x68] sm:$0xff] %v287
  %382 = vst [vmem:[#allocation2 + $0x70] sm:$0xff] %v354
  %383 = vst [vmem:[#allocation2 + $0x78] sm:$0xff] %v289
  %384 = vst [vmem:[#allocation2 + $0x80] sm:$0xff] %v291
  %385 = vst [vmem:[#allocation2 + $0x88] sm:$0xff] %v357
  %386 = vst [vmem:[#allocation2 + $0x90] sm:$0xff] %v295
  %387 = vst [vmem:[#allocation2 + $0x98] sm:$0xff] %v297
  %388 = vst [vmem:[#allocation2 + $0xa0] sm:$0xff] %v362
  %389 = vst [vmem:[#allocation2 + $0xa8] sm:$0xff] %v299
  %390 = vst [vmem:[#allocation2 + $0xb0] sm:$0xff] %v301
  %391 = vst [vmem:[#allocation2 + $0xb8] sm:$0xff] %v365
  %v392 = vld [vmem:[%s2] sm:$0xff]
  %v393 = vld [vmem:[%s2 + $0x8] sm:$0xf]
  %v394 = vld [vmem:[%s2 + $0xc] sm:$0xff]
  %v395 = vld [vmem:[%s2 + $0x14] sm:$0xf]
  %v396 = vld [vmem:[%s2 + $0x18] sm:$0xff]
  %v397 = vld [vmem:[%s2 + $0x20] sm:$0xf]
  %v398 = vld [vmem:[%s2 + $0x24] sm:$0xff]
  %v399 = vld [vmem:[%s2 + $0x2c] sm:$0xf]
  %v400 = vld [vmem:[%s2 + $0x30] sm:$0xff]
  %v401 = vld [vmem:[%s2 + $0x38] sm:$0xf]
  %v402 = vld [vmem:[%s2 + $0x3c] sm:$0xff]
  %v403 = vld [vmem:[%s2 + $0x44] sm:$0xf]
  %v404 = vld [vmem:[%s2 + $0x48] sm:$0xff]
  %v405 = vld [vmem:[%s2 + $0x50] sm:$0xf]
  %v406 = vld [vmem:[%s2 + $0x54] sm:$0xff]
  %v407 = vld [vmem:[%s2 + $0x5c] sm:$0xf]
  %v408 = vld [vmem:[%s2 + $0x60] sm:$0xff]
  %v409 = vld [vmem:[%s2 + $0x68] sm:$0xf]
  %v410 = vld [vmem:[%s2 + $0x6c] sm:$0xff]
  %v411 = vld [vmem:[%s2 + $0x74] sm:$0xf]
  %v412 = vld [vmem:[%s2 + $0x78] sm:$0xff]
  %v413 = vld [vmem:[%s2 + $0x80] sm:$0xf]
  %v414 = vld [vmem:[%s2 + $0x84] sm:$0xff]
  %v415 = vld [vmem:[%s2 + $0x8c] sm:$0xf]
  %v416 = vld [vmem:[%s2 + $0x90] sm:$0xff]
  %v417 = vld [vmem:[%s2 + $0x98] sm:$0xf]
  %v418 = vld [vmem:[%s2 + $0x9c] sm:$0xff]
  %v419 = vld [vmem:[%s2 + $0xa4] sm:$0xf]
  %v420 = vld [vmem:[%s2 + $0xa8] sm:$0xff]
  %v421 = vld [vmem:[%s2 + $0xb0] sm:$0xf]
  %v422 = vld [vmem:[%s2 + $0xb4] sm:$0xff]
  %v423 = vld [vmem:[%s2 + $0xbc] sm:$0xf]
  %v424 = vld [vmem:[%s4] sm:$0x7]
  %v426 = vlaneseq
  %v427 = vshrl.u32 %v426, 7
  %v428 = vsub.s32 0, %v427
  %v429 = vrot.slane %v424, %v428
  %v430 = vlaneseq
  %v431 = vshrl.u32 %v430, 7
  %v432 = vsub.s32 1, %v431
  %v433 = vrot.slane %v424, %v432
  %v434 = vlaneseq
  %v435 = vshrl.u32 %v434, 7
  %v436 = vsub.s32 2, %v435
  %v437 = vrot.slane %v424, %v436
  %s441 = smul.u32 0, 3
  %s442 = smul.addr %s441, 8
  %s443 = scalar_lea.vmem [#allocation2], %s442
  %v444 = vld [vmem:[%s443] sm:$0xff]
  %v445 = vld [vmem:[%s443 + $0x8] sm:$0xff]
  %v446 = vld [vmem:[%s443 + $0x10] sm:$0xff]
  %v479 = vunpack.c.l.b16 %v392
  %v480 = vunpack.c.h.b16 %v392
  %v481 = vunpack.c.l.b16 %v393
  %v482 = vunpack.c.l.b16 %v394
  %v483 = vunpack.c.h.b16 %v394
  %v484 = vunpack.c.l.b16 %v395
  %v485 = vunpack.c.l.b16 %v396
  %v486 = vunpack.c.h.b16 %v396
  %v487 = vunpack.c.l.b16 %v397
  %v488 = vunpack.c.l.b16 %v398
  %v489 = vunpack.c.h.b16 %v398
  %v490 = vunpack.c.l.b16 %v399
  %v491 = vunpack.c.l.b16 %v400
  %v492 = vunpack.c.h.b16 %v400
  %v493 = vunpack.c.l.b16 %v401
  %v494 = vunpack.c.l.b16 %v402
  %v495 = vunpack.c.h.b16 %v402
  %v496 = vunpack.c.l.b16 %v403
  %v497 = vunpack.c.l.b16 %v404
  %v498 = vunpack.c.h.b16 %v404
  %v499 = vunpack.c.l.b16 %v405
  %v500 = vunpack.c.l.b16 %v406
  %v501 = vunpack.c.h.b16 %v406
  %v502 = vunpack.c.l.b16 %v407
  %v503 = vunpack.c.l.b16 %v408
  %v504 = vunpack.c.h.b16 %v408
  %v505 = vunpack.c.l.b16 %v409
  %v506 = vunpack.c.l.b16 %v410
  %v507 = vunpack.c.h.b16 %v410
  %v508 = vunpack.c.l.b16 %v411
  %v509 = vunpack.c.l.b16 %v412
  %v510 = vunpack.c.h.b16 %v412
  %v511 = vunpack.c.l.b16 %v413
  %v512 = vunpack.c.l.b16 %v414
  %v513 = vunpack.c.h.b16 %v414
  %v514 = vunpack.c.l.b16 %v415
  %v515 = vunpack.c.l.b16 %v416
  %v516 = vunpack.c.h.b16 %v416
  %v517 = vunpack.c.l.b16 %v417
  %v518 = vunpack.c.l.b16 %v418
  %v519 = vunpack.c.h.b16 %v418
  %v520 = vunpack.c.l.b16 %v419
  %v521 = vunpack.c.l.b16 %v420
  %v522 = vunpack.c.h.b16 %v420
  %v523 = vunpack.c.l.b16 %v421
  %v524 = vunpack.c.l.b16 %v422
  %v525 = vunpack.c.h.b16 %v422
  %v526 = vunpack.c.l.b16 %v423
  %v527 = vpack.c.b16 %v482, %v479
  %v528 = vpack.c.b16 %v483, %v480
  %v529 = vpack.c.b16 %v484, %v481
  %v530 = vpack.c.b16 %v488, %v485
  %v531 = vpack.c.b16 %v489, %v486
  %v532 = vpack.c.b16 %v490, %v487
  %v533 = vpack.c.b16 %v494, %v491
  %v534 = vpack.c.b16 %v495, %v492
  %v535 = vpack.c.b16 %v496, %v493
  %v536 = vpack.c.b16 %v500, %v497
  %v537 = vpack.c.b16 %v501, %v498
  %v538 = vpack.c.b16 %v502, %v499
  %v539 = vpack.c.b16 %v506, %v503
  %v540 = vpack.c.b16 %v507, %v504
  %v541 = vpack.c.b16 %v508, %v505
  %v542 = vpack.c.b16 %v512, %v509
  %v543 = vpack.c.b16 %v513, %v510
  %v544 = vpack.c.b16 %v514, %v511
  %v545 = vpack.c.b16 %v518, %v515
  %v546 = vpack.c.b16 %v519, %v516
  %v547 = vpack.c.b16 %v520, %v517
  %v548 = vpack.c.b16 %v524, %v521
  %v549 = vpack.c.b16 %v525, %v522
  %v550 = vpack.c.b16 %v526, %v523
  %575 = vmatprep.subr.bf16.mxu0 %v549
  %576 = vmatpush1.bf16.msra.mxu0 %v548
  %577 = vmatprep.subr.bf16.mxu0 %v546
  %578 = vmatpush1.bf16.msra.mxu0 %v545
  %579 = vmatprep.subr.bf16.mxu0 %v543
  %580 = vmatpush1.bf16.msra.mxu0 %v542
  %581 = vmatprep.subr.bf16.mxu0 %v540
  %582 = vmatpush1.bf16.msra.mxu0 %v539
  %583 = vmatprep.subr.bf16.mxu0 %v537
  %584 = vmatpush1.bf16.msra.mxu0 %v536
  %585 = vmatprep.subr.bf16.mxu0 %v534
  %586 = vmatpush1.bf16.msra.mxu0 %v533
  %587 = vmatprep.subr.bf16.mxu0 %v531
  %588 = vmatpush1.bf16.msra.mxu0 %v530
  %589 = vmatprep.subr.bf16.mxu0 %v528
  %590 = vmatpush1.bf16.msra.mxu0 %v527
  %591 = vmatprep.subr.bf16.mxu0 0
  %592 = vmatpush2.bf16.msra.mxu0 0
  %593 = vmatprep.subr.bf16.mxu0 0
  %594 = vmatpush2.bf16.msra.mxu0 0
  %595 = vmatprep.subr.bf16.mxu0 0
  %596 = vmatpush2.bf16.msra.mxu0 0
  %597 = vmatprep.subr.bf16.mxu0 0
  %598 = vmatpush2.bf16.msra.mxu0 0
  %599 = vmatprep.subr.bf16.mxu0 0
  %600 = vmatpush2.bf16.msra.mxu0 0
  %601 = vmatprep.subr.bf16.mxu0 0
  %602 = vmatpush2.bf16.msra.mxu0 0
  %603 = vmatprep.subr.bf16.mxu0 0
  %604 = vmatpush2.bf16.msra.mxu0 0
  %605 = vmatprep.subr.bf16.mxu0 0
  %606 = vmatpush2.bf16.msra.mxu0 0
  %607 = vmatprep.mubr.bf16.mxu0 0
  %608 = vmatmul.mubr.bf16.gmra.mxu0 0
  %v609 = vpop.f32.mrf.mxu0
  %v610 = vadd.f32 %v429, %v609
  %v611 = vpop.f32.mrf.mxu0
  %v612 = vadd.f32 %v433, %v611
  %v613 = vpop.f32.mrf.mxu0
  %v614 = vpop.f32.mrf.mxu0
  %615 = vdwg.mxu0
  %616 = vmatprep.subr.bf16.mxu0 0
  %617 = vmatpush1.bf16.msra.mxu0 %v550
  %618 = vmatprep.subr.bf16.mxu0 0
  %619 = vmatpush1.bf16.msra.mxu0 %v547
  %620 = vmatprep.subr.bf16.mxu0 0
  %621 = vmatpush1.bf16.msra.mxu0 %v544
  %622 = vmatprep.subr.bf16.mxu0 0
  %623 = vmatpush1.bf16.msra.mxu0 %v541
  %624 = vmatprep.subr.bf16.mxu0 0
  %625 = vmatpush1.bf16.msra.mxu0 %v538
  %626 = vmatprep.subr.bf16.mxu0 0
  %627 = vmatpush1.bf16.msra.mxu0 %v535
  %628 = vmatprep.subr.bf16.mxu0 0
  %629 = vmatpush1.bf16.msra.mxu0 %v532
  %630 = vmatprep.subr.bf16.mxu0 0
  %631 = vmatpush1.bf16.msra.mxu0 %v529
  %632 = vmatprep.subr.bf16.mxu0 0
  %633 = vmatpush2.bf16.msra.mxu0 0
  %634 = vmatprep.subr.bf16.mxu0 0
  %635 = vmatpush2.bf16.msra.mxu0 0
  %636 = vmatprep.subr.bf16.mxu0 0
  %637 = vmatpush2.bf16.msra.mxu0 0
  %638 = vmatprep.subr.bf16.mxu0 0
  %639 = vmatpush2.bf16.msra.mxu0 0
  %640 = vmatprep.subr.bf16.mxu0 0
  %641 = vmatpush2.bf16.msra.mxu0 0
  %642 = vmatprep.subr.bf16.mxu0 0
  %643 = vmatpush2.bf16.msra.mxu0 0
  %644 = vmatprep.subr.bf16.mxu0 0
  %645 = vmatpush2.bf16.msra.mxu0 0
  %646 = vmatprep.subr.bf16.mxu0 0
  %647 = vmatpush2.bf16.msra.mxu0 0
  %648 = vmatprep.mubr.bf16.mxu0 0
  %649 = vmatmul.mubr.bf16.gmra.mxu0 0
  %v650 = vpop.f32.mrf.mxu0
  %v651 = vadd.f32 %v437, %v650
  %v652 = vpop.f32.mrf.mxu0
  %v653 = vpop.f32.mrf.mxu0
  %v654 = vpop.f32.mrf.mxu0
  %655 = vdwg.mxu0
  %v656 = vadd.f32 %v444, %v610
  %v657 = vxor.u32 %v656, 2147483648
  %v658 = vmul.f32 %v657, 1.442695
  %v659 = vpow.pop %v658
  %v660 = vadd.f32 %v659, 1.0
  %v661 = vrcp.pop %v660
  %v662 = vmul.f32 1.0, %v661
  %v663 = vadd.f32 %v445, %v612
  %v664 = vxor.u32 %v663, 2147483648
  %v665 = vmul.f32 %v664, 1.442695
  %v666 = vpow.pop %v665
  %v667 = vadd.f32 %v666, 1.0
  %v668 = vrcp.pop %v667
  %v669 = vmul.f32 1.0, %v668
  %v670 = vmul.f32 %v662, %v651
  %v671 = vadd.f32 %v446, %v670
  %v672 = vtanh.pop %v671
  %v673 = vsub.f32 1.0, %v669
  %v674 = vmul.f32 %v673, %v672
  %v675 = vmul.f32 %v669, 0.0
  %v676 = vadd.f32 %v674, %v675
  %s677 = smul.u32 1, 3
  %s678 = smul.addr %s677, 8
  %s679 = scalar_lea.vmem [#allocation2], %s678
  %v680 = vld [vmem:[%s679] sm:$0xff]
  %v681 = vld [vmem:[%s679 + $0x8] sm:$0xff]
  %v682 = vld [vmem:[%s679 + $0x10] sm:$0xff]
  %v683 = vpack.c.bf16 %v676, %v676
  %684 = vmatprep.subr.bf16.mxu0 %v549
  %685 = vmatpush1.bf16.msra.mxu0 %v548
  %686 = vmatprep.subr.bf16.mxu0 %v546
  %687 = vmatpush1.bf16.msra.mxu0 %v545
  %688 = vmatprep.subr.bf16.mxu0 %v543
  %689 = vmatpush1.bf16.msra.mxu0 %v542
  %690 = vmatprep.subr.bf16.mxu0 %v540
  %691 = vmatpush1.bf16.msra.mxu0 %v539
  %692 = vmatprep.subr.bf16.mxu0 %v537
  %693 = vmatpush1.bf16.msra.mxu0 %v536
  %694 = vmatprep.subr.bf16.mxu0 %v534
  %695 = vmatpush1.bf16.msra.mxu0 %v533
  %696 = vmatprep.subr.bf16.mxu0 %v531
  %697 = vmatpush1.bf16.msra.mxu0 %v530
  %698 = vmatprep.subr.bf16.mxu0 %v528
  %699 = vmatpush1.bf16.msra.mxu0 %v527
  %700 = vmatprep.subr.bf16.mxu0 0
  %701 = vmatpush2.bf16.msra.mxu0 0
  %702 = vmatprep.subr.bf16.mxu0 0
  %703 = vmatpush2.bf16.msra.mxu0 0
  %704 = vmatprep.subr.bf16.mxu0 0
  %705 = vmatpush2.bf16.msra.mxu0 0
  %706 = vmatprep.subr.bf16.mxu0 0
  %707 = vmatpush2.bf16.msra.mxu0 0
  %708 = vmatprep.subr.bf16.mxu0 0
  %709 = vmatpush2.bf16.msra.mxu0 0
  %710 = vmatprep.subr.bf16.mxu0 0
  %711 = vmatpush2.bf16.msra.mxu0 0
  %712 = vmatprep.subr.bf16.mxu0 0
  %713 = vmatpush2.bf16.msra.mxu0 0
  %714 = vmatprep.subr.bf16.mxu0 0
  %715 = vmatpush2.bf16.msra.mxu0 0
  %716 = vmatprep.mubr.bf16.mxu0 0
  %717 = vmatmul.mubr.bf16.gmra.mxu0 %v683
  %v718 = vpop.f32.mrf.mxu0
  %v719 = vadd.f32 %v429, %v718
  %v720 = vpop.f32.mrf.mxu0
  %v721 = vadd.f32 %v433, %v720
  %v722 = vpop.f32.mrf.mxu0
  %v723 = vpop.f32.mrf.mxu0
  %724 = vdwg.mxu0
  %725 = vmatprep.subr.bf16.mxu0 0
  %726 = vmatpush1.bf16.msra.mxu0 %v550
  %727 = vmatprep.subr.bf16.mxu0 0
  %728 = vmatpush1.bf16.msra.mxu0 %v547
  %729 = vmatprep.subr.bf16.mxu0 0
  %730 = vmatpush1.bf16.msra.mxu0 %v544
  %731 = vmatprep.subr.bf16.mxu0 0
  %732 = vmatpush1.bf16.msra.mxu0 %v541
  %733 = vmatprep.subr.bf16.mxu0 0
  %734 = vmatpush1.bf16.msra.mxu0 %v538
  %735 = vmatprep.subr.bf16.mxu0 0
  %736 = vmatpush1.bf16.msra.mxu0 %v535
  %737 = vmatprep.subr.bf16.mxu0 0
  %738 = vmatpush1.bf16.msra.mxu0 %v532
  %739 = vmatprep.subr.bf16.mxu0 0
  %740 = vmatpush1.bf16.msra.mxu0 %v529
  %741 = vmatprep.subr.bf16.mxu0 0
  %742 = vmatpush2.bf16.msra.mxu0 0
  %743 = vmatprep.subr.bf16.mxu0 0
  %744 = vmatpush2.bf16.msra.mxu0 0
  %745 = vmatprep.subr.bf16.mxu0 0
  %746 = vmatpush2.bf16.msra.mxu0 0
  %747 = vmatprep.subr.bf16.mxu0 0
  %748 = vmatpush2.bf16.msra.mxu0 0
  %749 = vmatprep.subr.bf16.mxu0 0
  %750 = vmatpush2.bf16.msra.mxu0 0
  %751 = vmatprep.subr.bf16.mxu0 0
  %752 = vmatpush2.bf16.msra.mxu0 0
  %753 = vmatprep.subr.bf16.mxu0 0
  %754 = vmatpush2.bf16.msra.mxu0 0
  %755 = vmatprep.subr.bf16.mxu0 0
  %756 = vmatpush2.bf16.msra.mxu0 0
  %757 = vmatprep.mubr.bf16.mxu0 0
  %758 = vmatmul.mubr.bf16.gmra.mxu0 %v683
  %v759 = vpop.f32.mrf.mxu0
  %v760 = vadd.f32 %v437, %v759
  %v761 = vpop.f32.mrf.mxu0
  %v762 = vpop.f32.mrf.mxu0
  %v763 = vpop.f32.mrf.mxu0
  %764 = vdwg.mxu0
  %v765 = vadd.f32 %v680, %v719
  %v766 = vxor.u32 %v765, 2147483648
  %v767 = vmul.f32 %v766, 1.442695
  %v768 = vpow.pop %v767
  %v769 = vadd.f32 %v768, 1.0
  %v770 = vrcp.pop %v769
  %v771 = vmul.f32 1.0, %v770
  %v772 = vadd.f32 %v681, %v721
  %v773 = vxor.u32 %v772, 2147483648
  %v774 = vmul.f32 %v773, 1.442695
  %v775 = vpow.pop %v774
  %v776 = vadd.f32 %v775, 1.0
  %v777 = vrcp.pop %v776
  %v778 = vmul.f32 1.0, %v777
  %v779 = vmul.f32 %v771, %v760
  %v780 = vadd.f32 %v682, %v779
  %v781 = vtanh.pop %v780
  %v782 = vsub.f32 1.0, %v778
  %v783 = vmul.f32 %v782, %v781
  %v784 = vmul.f32 %v778, %v676
  %v785 = vadd.f32 %v783, %v784
  %s786 = smul.u32 2, 3
  %s787 = smul.addr %s786, 8
  %s788 = scalar_lea.vmem [#allocation2], %s787
  %v789 = vld [vmem:[%s788] sm:$0xff]
  %v790 = vld [vmem:[%s788 + $0x8] sm:$0xff]
  %v791 = vld [vmem:[%s788 + $0x10] sm:$0xff]
  %v792 = vpack.c.bf16 %v785, %v785
  %793 = vmatprep.subr.bf16.mxu0 %v549
  %794 = vmatpush1.bf16.msra.mxu0 %v548
  %795 = vmatprep.subr.bf16.mxu0 %v546
  %796 = vmatpush1.bf16.msra.mxu0 %v545
  %797 = vmatprep.subr.bf16.mxu0 %v543
  %798 = vmatpush1.bf16.msra.mxu0 %v542
  %799 = vmatprep.subr.bf16.mxu0 %v540
  %800 = vmatpush1.bf16.msra.mxu0 %v539
  %801 = vmatprep.subr.bf16.mxu0 %v537
  %802 = vmatpush1.bf16.msra.mxu0 %v536
  %803 = vmatprep.subr.bf16.mxu0 %v534
  %804 = vmatpush1.bf16.msra.mxu0 %v533
  %805 = vmatprep.subr.bf16.mxu0 %v531
  %806 = vmatpush1.bf16.msra.mxu0 %v530
  %807 = vmatprep.subr.bf16.mxu0 %v528
  %808 = vmatpush1.bf16.msra.mxu0 %v527
  %809 = vmatprep.subr.bf16.mxu0 0
  %810 = vmatpush2.bf16.msra.mxu0 0
  %811 = vmatprep.subr.bf16.mxu0 0
  %812 = vmatpush2.bf16.msra.mxu0 0
  %813 = vmatprep.subr.bf16.mxu0 0
  %814 = vmatpush2.bf16.msra.mxu0 0
  %815 = vmatprep.subr.bf16.mxu0 0
  %816 = vmatpush2.bf16.msra.mxu0 0
  %817 = vmatprep.subr.bf16.mxu0 0
  %818 = vmatpush2.bf16.msra.mxu0 0
  %819 = vmatprep.subr.bf16.mxu0 0
  %820 = vmatpush2.bf16.msra.mxu0 0
  %821 = vmatprep.subr.bf16.mxu0 0
  %822 = vmatpush2.bf16.msra.mxu0 0
  %823 = vmatprep.subr.bf16.mxu0 0
  %824 = vmatpush2.bf16.msra.mxu0 0
  %825 = vmatprep.mubr.bf16.mxu0 0
  %826 = vmatmul.mubr.bf16.gmra.mxu0 %v792
  %v827 = vpop.f32.mrf.mxu0
  %v828 = vadd.f32 %v429, %v827
  %v829 = vpop.f32.mrf.mxu0
  %v830 = vadd.f32 %v433, %v829
  %v831 = vpop.f32.mrf.mxu0
  %v832 = vpop.f32.mrf.mxu0
  %833 = vdwg.mxu0
  %834 = vmatprep.subr.bf16.mxu0 0
  %835 = vmatpush1.bf16.msra.mxu0 %v550
  %836 = vmatprep.subr.bf16.mxu0 0
  %837 = vmatpush1.bf16.msra.mxu0 %v547
  %838 = vmatprep.subr.bf16.mxu0 0
  %839 = vmatpush1.bf16.msra.mxu0 %v544
  %840 = vmatprep.subr.bf16.mxu0 0
  %841 = vmatpush1.bf16.msra.mxu0 %v541
  %842 = vmatprep.subr.bf16.mxu0 0
  %843 = vmatpush1.bf16.msra.mxu0 %v538
  %844 = vmatprep.subr.bf16.mxu0 0
  %845 = vmatpush1.bf16.msra.mxu0 %v535
  %846 = vmatprep.subr.bf16.mxu0 0
  %847 = vmatpush1.bf16.msra.mxu0 %v532
  %848 = vmatprep.subr.bf16.mxu0 0
  %849 = vmatpush1.bf16.msra.mxu0 %v529
  %850 = vmatprep.subr.bf16.mxu0 0
  %851 = vmatpush2.bf16.msra.mxu0 0
  %852 = vmatprep.subr.bf16.mxu0 0
  %853 = vmatpush2.bf16.msra.mxu0 0
  %854 = vmatprep.subr.bf16.mxu0 0
  %855 = vmatpush2.bf16.msra.mxu0 0
  %856 = vmatprep.subr.bf16.mxu0 0
  %857 = vmatpush2.bf16.msra.mxu0 0
  %858 = vmatprep.subr.bf16.mxu0 0
  %859 = vmatpush2.bf16.msra.mxu0 0
  %860 = vmatprep.subr.bf16.mxu0 0
  %861 = vmatpush2.bf16.msra.mxu0 0
  %862 = vmatprep.subr.bf16.mxu0 0
  %863 = vmatpush2.bf16.msra.mxu0 0
  %864 = vmatprep.subr.bf16.mxu0 0
  %865 = vmatpush2.bf16.msra.mxu0 0
  %866 = vmatprep.mubr.bf16.mxu0 0
  %867 = vmatmul.mubr.bf16.gmra.mxu0 %v792
  %v868 = vpop.f32.mrf.mxu0
  %v869 = vadd.f32 %v437, %v868
  %v870 = vpop.f32.mrf.mxu0
  %v871 = vpop.f32.mrf.mxu0
  %v872 = vpop.f32.mrf.mxu0
  %873 = vdwg.mxu0
  %v874 = vadd.f32 %v789, %v828
  %v875 = vxor.u32 %v874, 2147483648
  %v876 = vmul.f32 %v875, 1.442695
  %v877 = vpow.pop %v876
  %v878 = vadd.f32 %v877, 1.0
  %v879 = vrcp.pop %v878
  %v880 = vmul.f32 1.0, %v879
  %v881 = vadd.f32 %v790, %v830
  %v882 = vxor.u32 %v881, 2147483648
  %v883 = vmul.f32 %v882, 1.442695
  %v884 = vpow.pop %v883
  %v885 = vadd.f32 %v884, 1.0
  %v886 = vrcp.pop %v885
  %v887 = vmul.f32 1.0, %v886
  %v888 = vmul.f32 %v880, %v869
  %v889 = vadd.f32 %v791, %v888
  %v890 = vtanh.pop %v889
  %v891 = vsub.f32 1.0, %v887
  %v892 = vmul.f32 %v891, %v890
  %v893 = vmul.f32 %v887, %v785
  %v894 = vadd.f32 %v892, %v893
  %s895 = smul.u32 3, 3
  %s896 = smul.addr %s895, 8
  %s897 = scalar_lea.vmem [#allocation2], %s896
  %v898 = vld [vmem:[%s897] sm:$0xff]
  %v899 = vld [vmem:[%s897 + $0x8] sm:$0xff]
  %v900 = vld [vmem:[%s897 + $0x10] sm:$0xff]
  %v901 = vpack.c.bf16 %v894, %v894
  %902 = vmatprep.subr.bf16.mxu0 %v549
  %903 = vmatpush1.bf16.msra.mxu0 %v548
  %904 = vmatprep.subr.bf16.mxu0 %v546
  %905 = vmatpush1.bf16.msra.mxu0 %v545
  %906 = vmatprep.subr.bf16.mxu0 %v543
  %907 = vmatpush1.bf16.msra.mxu0 %v542
  %908 = vmatprep.subr.bf16.mxu0 %v540
  %909 = vmatpush1.bf16.msra.mxu0 %v539
  %910 = vmatprep.subr.bf16.mxu0 %v537
  %911 = vmatpush1.bf16.msra.mxu0 %v536
  %912 = vmatprep.subr.bf16.mxu0 %v534
  %913 = vmatpush1.bf16.msra.mxu0 %v533
  %914 = vmatprep.subr.bf16.mxu0 %v531
  %915 = vmatpush1.bf16.msra.mxu0 %v530
  %916 = vmatprep.subr.bf16.mxu0 %v528
  %917 = vmatpush1.bf16.msra.mxu0 %v527
  %918 = vmatprep.subr.bf16.mxu0 0
  %919 = vmatpush2.bf16.msra.mxu0 0
  %920 = vmatprep.subr.bf16.mxu0 0
  %921 = vmatpush2.bf16.msra.mxu0 0
  %922 = vmatprep.subr.bf16.mxu0 0
  %923 = vmatpush2.bf16.msra.mxu0 0
  %924 = vmatprep.subr.bf16.mxu0 0
  %925 = vmatpush2.bf16.msra.mxu0 0
  %926 = vmatprep.subr.bf16.mxu0 0
  %927 = vmatpush2.bf16.msra.mxu0 0
  %928 = vmatprep.subr.bf16.mxu0 0
  %929 = vmatpush2.bf16.msra.mxu0 0
  %930 = vmatprep.subr.bf16.mxu0 0
  %931 = vmatpush2.bf16.msra.mxu0 0
  %932 = vmatprep.subr.bf16.mxu0 0
  %933 = vmatpush2.bf16.msra.mxu0 0
  %934 = vmatprep.mubr.bf16.mxu0 0
  %935 = vmatmul.mubr.bf16.gmra.mxu0 %v901
  %v936 = vpop.f32.mrf.mxu0
  %v937 = vadd.f32 %v429, %v936
  %v938 = vpop.f32.mrf.mxu0
  %v939 = vadd.f32 %v433, %v938
  %v940 = vpop.f32.mrf.mxu0
  %v941 = vpop.f32.mrf.mxu0
  %942 = vdwg.mxu0
  %943 = vmatprep.subr.bf16.mxu0 0
  %944 = vmatpush1.bf16.msra.mxu0 %v550
  %945 = vmatprep.subr.bf16.mxu0 0
  %946 = vmatpush1.bf16.msra.mxu0 %v547
  %947 = vmatprep.subr.bf16.mxu0 0
  %948 = vmatpush1.bf16.msra.mxu0 %v544
  %949 = vmatprep.subr.bf16.mxu0 0
  %950 = vmatpush1.bf16.msra.mxu0 %v541
  %951 = vmatprep.subr.bf16.mxu0 0
  %952 = vmatpush1.bf16.msra.mxu0 %v538
  %953 = vmatprep.subr.bf16.mxu0 0
  %954 = vmatpush1.bf16.msra.mxu0 %v535
  %955 = vmatprep.subr.bf16.mxu0 0
  %956 = vmatpush1.bf16.msra.mxu0 %v532
  %957 = vmatprep.subr.bf16.mxu0 0
  %958 = vmatpush1.bf16.msra.mxu0 %v529
  %959 = vmatprep.subr.bf16.mxu0 0
  %960 = vmatpush2.bf16.msra.mxu0 0
  %961 = vmatprep.subr.bf16.mxu0 0
  %962 = vmatpush2.bf16.msra.mxu0 0
  %963 = vmatprep.subr.bf16.mxu0 0
  %964 = vmatpush2.bf16.msra.mxu0 0
  %965 = vmatprep.subr.bf16.mxu0 0
  %966 = vmatpush2.bf16.msra.mxu0 0
  %967 = vmatprep.subr.bf16.mxu0 0
  %968 = vmatpush2.bf16.msra.mxu0 0
  %969 = vmatprep.subr.bf16.mxu0 0
  %970 = vmatpush2.bf16.msra.mxu0 0
  %971 = vmatprep.subr.bf16.mxu0 0
  %972 = vmatpush2.bf16.msra.mxu0 0
  %973 = vmatprep.subr.bf16.mxu0 0
  %974 = vmatpush2.bf16.msra.mxu0 0
  %975 = vmatprep.mubr.bf16.mxu0 0
  %976 = vmatmul.mubr.bf16.gmra.mxu0 %v901
  %v977 = vpop.f32.mrf.mxu0
  %v978 = vadd.f32 %v437, %v977
  %v979 = vpop.f32.mrf.mxu0
  %v980 = vpop.f32.mrf.mxu0
  %v981 = vpop.f32.mrf.mxu0
  %982 = vdwg.mxu0
  %v983 = vadd.f32 %v898, %v937
  %v984 = vxor.u32 %v983, 2147483648
  %v985 = vmul.f32 %v984, 1.442695
  %v986 = vpow.pop %v985
  %v987 = vadd.f32 %v986, 1.0
  %v988 = vrcp.pop %v987
  %v989 = vmul.f32 1.0, %v988
  %v990 = vadd.f32 %v899, %v939
  %v991 = vxor.u32 %v990, 2147483648
  %v992 = vmul.f32 %v991, 1.442695
  %v993 = vpow.pop %v992
  %v994 = vadd.f32 %v993, 1.0
  %v995 = vrcp.pop %v994
  %v996 = vmul.f32 1.0, %v995
  %v997 = vmul.f32 %v989, %v978
  %v998 = vadd.f32 %v900, %v997
  %v999 = vtanh.pop %v998
  %v1000 = vsub.f32 1.0, %v996
  %v1001 = vmul.f32 %v1000, %v999
  %v1002 = vmul.f32 %v996, %v894
  %v1003 = vadd.f32 %v1001, %v1002
  %s1004 = smul.u32 4, 3
  %s1005 = smul.addr %s1004, 8
  %s1006 = scalar_lea.vmem [#allocation2], %s1005
  %v1007 = vld [vmem:[%s1006] sm:$0xff]
  %v1008 = vld [vmem:[%s1006 + $0x8] sm:$0xff]
  %v1009 = vld [vmem:[%s1006 + $0x10] sm:$0xff]
  %v1010 = vpack.c.bf16 %v1003, %v1003
  %1011 = vmatprep.subr.bf16.mxu0 %v549
  %1012 = vmatpush1.bf16.msra.mxu0 %v548
  %1013 = vmatprep.subr.bf16.mxu0 %v546
  %1014 = vmatpush1.bf16.msra.mxu0 %v545
  %1015 = vmatprep.subr.bf16.mxu0 %v543
  %1016 = vmatpush1.bf16.msra.mxu0 %v542
  %1017 = vmatprep.subr.bf16.mxu0 %v540
  %1018 = vmatpush1.bf16.msra.mxu0 %v539
  %1019 = vmatprep.subr.bf16.mxu0 %v537
  %1020 = vmatpush1.bf16.msra.mxu0 %v536
  %1021 = vmatprep.subr.bf16.mxu0 %v534
  %1022 = vmatpush1.bf16.msra.mxu0 %v533
  %1023 = vmatprep.subr.bf16.mxu0 %v531
  %1024 = vmatpush1.bf16.msra.mxu0 %v530
  %1025 = vmatprep.subr.bf16.mxu0 %v528
  %1026 = vmatpush1.bf16.msra.mxu0 %v527
  %1027 = vmatprep.subr.bf16.mxu0 0
  %1028 = vmatpush2.bf16.msra.mxu0 0
  %1029 = vmatprep.subr.bf16.mxu0 0
  %1030 = vmatpush2.bf16.msra.mxu0 0
  %1031 = vmatprep.subr.bf16.mxu0 0
  %1032 = vmatpush2.bf16.msra.mxu0 0
  %1033 = vmatprep.subr.bf16.mxu0 0
  %1034 = vmatpush2.bf16.msra.mxu0 0
  %1035 = vmatprep.subr.bf16.mxu0 0
  %1036 = vmatpush2.bf16.msra.mxu0 0
  %1037 = vmatprep.subr.bf16.mxu0 0
  %1038 = vmatpush2.bf16.msra.mxu0 0
  %1039 = vmatprep.subr.bf16.mxu0 0
  %1040 = vmatpush2.bf16.msra.mxu0 0
  %1041 = vmatprep.subr.bf16.mxu0 0
  %1042 = vmatpush2.bf16.msra.mxu0 0
  %1043 = vmatprep.mubr.bf16.mxu0 0
  %1044 = vmatmul.mubr.bf16.gmra.mxu0 %v1010
  %v1045 = vpop.f32.mrf.mxu0
  %v1046 = vadd.f32 %v429, %v1045
  %v1047 = vpop.f32.mrf.mxu0
  %v1048 = vadd.f32 %v433, %v1047
  %v1049 = vpop.f32.mrf.mxu0
  %v1050 = vpop.f32.mrf.mxu0
  %1051 = vdwg.mxu0
  %1052 = vmatprep.subr.bf16.mxu0 0
  %1053 = vmatpush1.bf16.msra.mxu0 %v550
  %1054 = vmatprep.subr.bf16.mxu0 0
  %1055 = vmatpush1.bf16.msra.mxu0 %v547
  %1056 = vmatprep.subr.bf16.mxu0 0
  %1057 = vmatpush1.bf16.msra.mxu0 %v544
  %1058 = vmatprep.subr.bf16.mxu0 0
  %1059 = vmatpush1.bf16.msra.mxu0 %v541
  %1060 = vmatprep.subr.bf16.mxu0 0
  %1061 = vmatpush1.bf16.msra.mxu0 %v538
  %1062 = vmatprep.subr.bf16.mxu0 0
  %1063 = vmatpush1.bf16.msra.mxu0 %v535
  %1064 = vmatprep.subr.bf16.mxu0 0
  %1065 = vmatpush1.bf16.msra.mxu0 %v532
  %1066 = vmatprep.subr.bf16.mxu0 0
  %1067 = vmatpush1.bf16.msra.mxu0 %v529
  %1068 = vmatprep.subr.bf16.mxu0 0
  %1069 = vmatpush2.bf16.msra.mxu0 0
  %1070 = vmatprep.subr.bf16.mxu0 0
  %1071 = vmatpush2.bf16.msra.mxu0 0
  %1072 = vmatprep.subr.bf16.mxu0 0
  %1073 = vmatpush2.bf16.msra.mxu0 0
  %1074 = vmatprep.subr.bf16.mxu0 0
  %1075 = vmatpush2.bf16.msra.mxu0 0
  %1076 = vmatprep.subr.bf16.mxu0 0
  %1077 = vmatpush2.bf16.msra.mxu0 0
  %1078 = vmatprep.subr.bf16.mxu0 0
  %1079 = vmatpush2.bf16.msra.mxu0 0
  %1080 = vmatprep.subr.bf16.mxu0 0
  %1081 = vmatpush2.bf16.msra.mxu0 0
  %1082 = vmatprep.subr.bf16.mxu0 0
  %1083 = vmatpush2.bf16.msra.mxu0 0
  %1084 = vmatprep.mubr.bf16.mxu0 0
  %1085 = vmatmul.mubr.bf16.gmra.mxu0 %v1010
  %v1086 = vpop.f32.mrf.mxu0
  %v1087 = vadd.f32 %v437, %v1086
  %v1088 = vpop.f32.mrf.mxu0
  %v1089 = vpop.f32.mrf.mxu0
  %v1090 = vpop.f32.mrf.mxu0
  %1091 = vdwg.mxu0
  %v1092 = vadd.f32 %v1007, %v1046
  %v1093 = vxor.u32 %v1092, 2147483648
  %v1094 = vmul.f32 %v1093, 1.442695
  %v1095 = vpow.pop %v1094
  %v1096 = vadd.f32 %v1095, 1.0
  %v1097 = vrcp.pop %v1096
  %v1098 = vmul.f32 1.0, %v1097
  %v1099 = vadd.f32 %v1008, %v1048
  %v1100 = vxor.u32 %v1099, 2147483648
  %v1101 = vmul.f32 %v1100, 1.442695
  %v1102 = vpow.pop %v1101
  %v1103 = vadd.f32 %v1102, 1.0
  %v1104 = vrcp.pop %v1103
  %v1105 = vmul.f32 1.0, %v1104
  %v1106 = vmul.f32 %v1098, %v1087
  %v1107 = vadd.f32 %v1009, %v1106
  %v1108 = vtanh.pop %v1107
  %v1109 = vsub.f32 1.0, %v1105
  %v1110 = vmul.f32 %v1109, %v1108
  %v1111 = vmul.f32 %v1105, %v1003
  %v1112 = vadd.f32 %v1110, %v1111
  %s1113 = smul.u32 5, 3
  %s1114 = smul.addr %s1113, 8
  %s1115 = scalar_lea.vmem [#allocation2], %s1114
  %v1116 = vld [vmem:[%s1115] sm:$0xff]
  %v1117 = vld [vmem:[%s1115 + $0x8] sm:$0xff]
  %v1118 = vld [vmem:[%s1115 + $0x10] sm:$0xff]
  %v1119 = vpack.c.bf16 %v1112, %v1112
  %1120 = vmatprep.subr.bf16.mxu0 %v549
  %1121 = vmatpush1.bf16.msra.mxu0 %v548
  %1122 = vmatprep.subr.bf16.mxu0 %v546
  %1123 = vmatpush1.bf16.msra.mxu0 %v545
  %1124 = vmatprep.subr.bf16.mxu0 %v543
  %1125 = vmatpush1.bf16.msra.mxu0 %v542
  %1126 = vmatprep.subr.bf16.mxu0 %v540
  %1127 = vmatpush1.bf16.msra.mxu0 %v539
  %1128 = vmatprep.subr.bf16.mxu0 %v537
  %1129 = vmatpush1.bf16.msra.mxu0 %v536
  %1130 = vmatprep.subr.bf16.mxu0 %v534
  %1131 = vmatpush1.bf16.msra.mxu0 %v533
  %1132 = vmatprep.subr.bf16.mxu0 %v531
  %1133 = vmatpush1.bf16.msra.mxu0 %v530
  %1134 = vmatprep.subr.bf16.mxu0 %v528
  %1135 = vmatpush1.bf16.msra.mxu0 %v527
  %1136 = vmatprep.subr.bf16.mxu0 0
  %1137 = vmatpush2.bf16.msra.mxu0 0
  %1138 = vmatprep.subr.bf16.mxu0 0
  %1139 = vmatpush2.bf16.msra.mxu0 0
  %1140 = vmatprep.subr.bf16.mxu0 0
  %1141 = vmatpush2.bf16.msra.mxu0 0
  %1142 = vmatprep.subr.bf16.mxu0 0
  %1143 = vmatpush2.bf16.msra.mxu0 0
  %1144 = vmatprep.subr.bf16.mxu0 0
  %1145 = vmatpush2.bf16.msra.mxu0 0
  %1146 = vmatprep.subr.bf16.mxu0 0
  %1147 = vmatpush2.bf16.msra.mxu0 0
  %1148 = vmatprep.subr.bf16.mxu0 0
  %1149 = vmatpush2.bf16.msra.mxu0 0
  %1150 = vmatprep.subr.bf16.mxu0 0
  %1151 = vmatpush2.bf16.msra.mxu0 0
  %1152 = vmatprep.mubr.bf16.mxu0 0
  %1153 = vmatmul.mubr.bf16.gmra.mxu0 %v1119
  %v1154 = vpop.f32.mrf.mxu0
  %v1155 = vadd.f32 %v429, %v1154
  %v1156 = vpop.f32.mrf.mxu0
  %v1157 = vadd.f32 %v433, %v1156
  %v1158 = vpop.f32.mrf.mxu0
  %v1159 = vpop.f32.mrf.mxu0
  %1160 = vdwg.mxu0
  %1161 = vmatprep.subr.bf16.mxu0 0
  %1162 = vmatpush1.bf16.msra.mxu0 %v550
  %1163 = vmatprep.subr.bf16.mxu0 0
  %1164 = vmatpush1.bf16.msra.mxu0 %v547
  %1165 = vmatprep.subr.bf16.mxu0 0
  %1166 = vmatpush1.bf16.msra.mxu0 %v544
  %1167 = vmatprep.subr.bf16.mxu0 0
  %1168 = vmatpush1.bf16.msra.mxu0 %v541
  %1169 = vmatprep.subr.bf16.mxu0 0
  %1170 = vmatpush1.bf16.msra.mxu0 %v538
  %1171 = vmatprep.subr.bf16.mxu0 0
  %1172 = vmatpush1.bf16.msra.mxu0 %v535
  %1173 = vmatprep.subr.bf16.mxu0 0
  %1174 = vmatpush1.bf16.msra.mxu0 %v532
  %1175 = vmatprep.subr.bf16.mxu0 0
  %1176 = vmatpush1.bf16.msra.mxu0 %v529
  %1177 = vmatprep.subr.bf16.mxu0 0
  %1178 = vmatpush2.bf16.msra.mxu0 0
  %1179 = vmatprep.subr.bf16.mxu0 0
  %1180 = vmatpush2.bf16.msra.mxu0 0
  %1181 = vmatprep.subr.bf16.mxu0 0
  %1182 = vmatpush2.bf16.msra.mxu0 0
  %1183 = vmatprep.subr.bf16.mxu0 0
  %1184 = vmatpush2.bf16.msra.mxu0 0
  %1185 = vmatprep.subr.bf16.mxu0 0
  %1186 = vmatpush2.bf16.msra.mxu0 0
  %1187 = vmatprep.subr.bf16.mxu0 0
  %1188 = vmatpush2.bf16.msra.mxu0 0
  %1189 = vmatprep.subr.bf16.mxu0 0
  %1190 = vmatpush2.bf16.msra.mxu0 0
  %1191 = vmatprep.subr.bf16.mxu0 0
  %1192 = vmatpush2.bf16.msra.mxu0 0
  %1193 = vmatprep.mubr.bf16.mxu0 0
  %1194 = vmatmul.mubr.bf16.gmra.mxu0 %v1119
  %v1195 = vpop.f32.mrf.mxu0
  %v1196 = vadd.f32 %v437, %v1195
  %v1197 = vpop.f32.mrf.mxu0
  %v1198 = vpop.f32.mrf.mxu0
  %v1199 = vpop.f32.mrf.mxu0
  %1200 = vdwg.mxu0
  %v1201 = vadd.f32 %v1116, %v1155
  %v1202 = vxor.u32 %v1201, 2147483648
  %v1203 = vmul.f32 %v1202, 1.442695
  %v1204 = vpow.pop %v1203
  %v1205 = vadd.f32 %v1204, 1.0
  %v1206 = vrcp.pop %v1205
  %v1207 = vmul.f32 1.0, %v1206
  %v1208 = vadd.f32 %v1117, %v1157
  %v1209 = vxor.u32 %v1208, 2147483648
  %v1210 = vmul.f32 %v1209, 1.442695
  %v1211 = vpow.pop %v1210
  %v1212 = vadd.f32 %v1211, 1.0
  %v1213 = vrcp.pop %v1212
  %v1214 = vmul.f32 1.0, %v1213
  %v1215 = vmul.f32 %v1207, %v1196
  %v1216 = vadd.f32 %v1118, %v1215
  %v1217 = vtanh.pop %v1216
  %v1218 = vsub.f32 1.0, %v1214
  %v1219 = vmul.f32 %v1218, %v1217
  %v1220 = vmul.f32 %v1214, %v1112
  %v1221 = vadd.f32 %v1219, %v1220
  %s1222 = smul.u32 6, 3
  %s1223 = smul.addr %s1222, 8
  %s1224 = scalar_lea.vmem [#allocation2], %s1223
  %v1225 = vld [vmem:[%s1224] sm:$0xff]
  %v1226 = vld [vmem:[%s1224 + $0x8] sm:$0xff]
  %v1227 = vld [vmem:[%s1224 + $0x10] sm:$0xff]
  %v1228 = vpack.c.bf16 %v1221, %v1221
  %1229 = vmatprep.subr.bf16.mxu0 %v549
  %1230 = vmatpush1.bf16.msra.mxu0 %v548
  %1231 = vmatprep.subr.bf16.mxu0 %v546
  %1232 = vmatpush1.bf16.msra.mxu0 %v545
  %1233 = vmatprep.subr.bf16.mxu0 %v543
  %1234 = vmatpush1.bf16.msra.mxu0 %v542
  %1235 = vmatprep.subr.bf16.mxu0 %v540
  %1236 = vmatpush1.bf16.msra.mxu0 %v539
  %1237 = vmatprep.subr.bf16.mxu0 %v537
  %1238 = vmatpush1.bf16.msra.mxu0 %v536
  %1239 = vmatprep.subr.bf16.mxu0 %v534
  %1240 = vmatpush1.bf16.msra.mxu0 %v533
  %1241 = vmatprep.subr.bf16.mxu0 %v531
  %1242 = vmatpush1.bf16.msra.mxu0 %v530
  %1243 = vmatprep.subr.bf16.mxu0 %v528
  %1244 = vmatpush1.bf16.msra.mxu0 %v527
  %1245 = vmatprep.subr.bf16.mxu0 0
  %1246 = vmatpush2.bf16.msra.mxu0 0
  %1247 = vmatprep.subr.bf16.mxu0 0
  %1248 = vmatpush2.bf16.msra.mxu0 0
  %1249 = vmatprep.subr.bf16.mxu0 0
  %1250 = vmatpush2.bf16.msra.mxu0 0
  %1251 = vmatprep.subr.bf16.mxu0 0
  %1252 = vmatpush2.bf16.msra.mxu0 0
  %1253 = vmatprep.subr.bf16.mxu0 0
  %1254 = vmatpush2.bf16.msra.mxu0 0
  %1255 = vmatprep.subr.bf16.mxu0 0
  %1256 = vmatpush2.bf16.msra.mxu0 0
  %1257 = vmatprep.subr.bf16.mxu0 0
  %1258 = vmatpush2.bf16.msra.mxu0 0
  %1259 = vmatprep.subr.bf16.mxu0 0
  %1260 = vmatpush2.bf16.msra.mxu0 0
  %1261 = vmatprep.mubr.bf16.mxu0 0
  %1262 = vmatmul.mubr.bf16.gmra.mxu0 %v1228
  %v1263 = vpop.f32.mrf.mxu0
  %v1264 = vadd.f32 %v429, %v1263
  %v1265 = vpop.f32.mrf.mxu0
  %v1266 = vadd.f32 %v433, %v1265
  %v1267 = vpop.f32.mrf.mxu0
  %v1268 = vpop.f32.mrf.mxu0
  %1269 = vdwg.mxu0
  %1270 = vmatprep.subr.bf16.mxu0 0
  %1271 = vmatpush1.bf16.msra.mxu0 %v550
  %1272 = vmatprep.subr.bf16.mxu0 0
  %1273 = vmatpush1.bf16.msra.mxu0 %v547
  %1274 = vmatprep.subr.bf16.mxu0 0
  %1275 = vmatpush1.bf16.msra.mxu0 %v544
  %1276 = vmatprep.subr.bf16.mxu0 0
  %1277 = vmatpush1.bf16.msra.mxu0 %v541
  %1278 = vmatprep.subr.bf16.mxu0 0
  %1279 = vmatpush1.bf16.msra.mxu0 %v538
  %1280 = vmatprep.subr.bf16.mxu0 0
  %1281 = vmatpush1.bf16.msra.mxu0 %v535
  %1282 = vmatprep.subr.bf16.mxu0 0
  %1283 = vmatpush1.bf16.msra.mxu0 %v532
  %1284 = vmatprep.subr.bf16.mxu0 0
  %1285 = vmatpush1.bf16.msra.mxu0 %v529
  %1286 = vmatprep.subr.bf16.mxu0 0
  %1287 = vmatpush2.bf16.msra.mxu0 0
  %1288 = vmatprep.subr.bf16.mxu0 0
  %1289 = vmatpush2.bf16.msra.mxu0 0
  %1290 = vmatprep.subr.bf16.mxu0 0
  %1291 = vmatpush2.bf16.msra.mxu0 0
  %1292 = vmatprep.subr.bf16.mxu0 0
  %1293 = vmatpush2.bf16.msra.mxu0 0
  %1294 = vmatprep.subr.bf16.mxu0 0
  %1295 = vmatpush2.bf16.msra.mxu0 0
  %1296 = vmatprep.subr.bf16.mxu0 0
  %1297 = vmatpush2.bf16.msra.mxu0 0
  %1298 = vmatprep.subr.bf16.mxu0 0
  %1299 = vmatpush2.bf16.msra.mxu0 0
  %1300 = vmatprep.subr.bf16.mxu0 0
  %1301 = vmatpush2.bf16.msra.mxu0 0
  %1302 = vmatprep.mubr.bf16.mxu0 0
  %1303 = vmatmul.mubr.bf16.gmra.mxu0 %v1228
  %v1304 = vpop.f32.mrf.mxu0
  %v1305 = vadd.f32 %v437, %v1304
  %v1306 = vpop.f32.mrf.mxu0
  %v1307 = vpop.f32.mrf.mxu0
  %v1308 = vpop.f32.mrf.mxu0
  %1309 = vdwg.mxu0
  %v1310 = vadd.f32 %v1225, %v1264
  %v1311 = vxor.u32 %v1310, 2147483648
  %v1312 = vmul.f32 %v1311, 1.442695
  %v1313 = vpow.pop %v1312
  %v1314 = vadd.f32 %v1313, 1.0
  %v1315 = vrcp.pop %v1314
  %v1316 = vmul.f32 1.0, %v1315
  %v1317 = vadd.f32 %v1226, %v1266
  %v1318 = vxor.u32 %v1317, 2147483648
  %v1319 = vmul.f32 %v1318, 1.442695
  %v1320 = vpow.pop %v1319
  %v1321 = vadd.f32 %v1320, 1.0
  %v1322 = vrcp.pop %v1321
  %v1323 = vmul.f32 1.0, %v1322
  %v1324 = vmul.f32 %v1316, %v1305
  %v1325 = vadd.f32 %v1227, %v1324
  %v1326 = vtanh.pop %v1325
  %v1327 = vsub.f32 1.0, %v1323
  %v1328 = vmul.f32 %v1327, %v1326
  %v1329 = vmul.f32 %v1323, %v1221
  %v1330 = vadd.f32 %v1328, %v1329
  %s1331 = smul.u32 7, 3
  %s1332 = smul.addr %s1331, 8
  %s1333 = scalar_lea.vmem [#allocation2], %s1332
  %v1334 = vld [vmem:[%s1333] sm:$0xff]
  %v1335 = vld [vmem:[%s1333 + $0x8] sm:$0xff]
  %v1336 = vld [vmem:[%s1333 + $0x10] sm:$0xff]
  %v1337 = vpack.c.bf16 %v1330, %v1330
  %1338 = vmatprep.subr.bf16.mxu0 %v549
  %1339 = vmatpush1.bf16.msra.mxu0 %v548
  %1340 = vmatprep.subr.bf16.mxu0 %v546
  %1341 = vmatpush1.bf16.msra.mxu0 %v545
  %1342 = vmatprep.subr.bf16.mxu0 %v543
  %1343 = vmatpush1.bf16.msra.mxu0 %v542
  %1344 = vmatprep.subr.bf16.mxu0 %v540
  %1345 = vmatpush1.bf16.msra.mxu0 %v539
  %1346 = vmatprep.subr.bf16.mxu0 %v537
  %1347 = vmatpush1.bf16.msra.mxu0 %v536
  %1348 = vmatprep.subr.bf16.mxu0 %v534
  %1349 = vmatpush1.bf16.msra.mxu0 %v533
  %1350 = vmatprep.subr.bf16.mxu0 %v531
  %1351 = vmatpush1.bf16.msra.mxu0 %v530
  %1352 = vmatprep.subr.bf16.mxu0 %v528
  %1353 = vmatpush1.bf16.msra.mxu0 %v527
  %1354 = vmatprep.subr.bf16.mxu0 0
  %1355 = vmatpush2.bf16.msra.mxu0 0
  %1356 = vmatprep.subr.bf16.mxu0 0
  %1357 = vmatpush2.bf16.msra.mxu0 0
  %1358 = vmatprep.subr.bf16.mxu0 0
  %1359 = vmatpush2.bf16.msra.mxu0 0
  %1360 = vmatprep.subr.bf16.mxu0 0
  %1361 = vmatpush2.bf16.msra.mxu0 0
  %1362 = vmatprep.subr.bf16.mxu0 0
  %1363 = vmatpush2.bf16.msra.mxu0 0
  %1364 = vmatprep.subr.bf16.mxu0 0
  %1365 = vmatpush2.bf16.msra.mxu0 0
  %1366 = vmatprep.subr.bf16.mxu0 0
  %1367 = vmatpush2.bf16.msra.mxu0 0
  %1368 = vmatprep.subr.bf16.mxu0 0
  %1369 = vmatpush2.bf16.msra.mxu0 0
  %1370 = vmatprep.mubr.bf16.mxu0 0
  %1371 = vmatmul.mubr.bf16.gmra.mxu0 %v1337
  %v1372 = vpop.f32.mrf.mxu0
  %v1373 = vadd.f32 %v429, %v1372
  %v1374 = vpop.f32.mrf.mxu0
  %v1375 = vadd.f32 %v433, %v1374
  %v1376 = vpop.f32.mrf.mxu0
  %v1377 = vpop.f32.mrf.mxu0
  %1378 = vdwg.mxu0
  %1379 = vmatprep.subr.bf16.mxu0 0
  %1380 = vmatpush1.bf16.msra.mxu0 %v550
  %1381 = vmatprep.subr.bf16.mxu0 0
  %1382 = vmatpush1.bf16.msra.mxu0 %v547
  %1383 = vmatprep.subr.bf16.mxu0 0
  %1384 = vmatpush1.bf16.msra.mxu0 %v544
  %1385 = vmatprep.subr.bf16.mxu0 0
  %1386 = vmatpush1.bf16.msra.mxu0 %v541
  %1387 = vmatprep.subr.bf16.mxu0 0
  %1388 = vmatpush1.bf16.msra.mxu0 %v538
  %1389 = vmatprep.subr.bf16.mxu0 0
  %1390 = vmatpush1.bf16.msra.mxu0 %v535
  %1391 = vmatprep.subr.bf16.mxu0 0
  %1392 = vmatpush1.bf16.msra.mxu0 %v532
  %1393 = vmatprep.subr.bf16.mxu0 0
  %1394 = vmatpush1.bf16.msra.mxu0 %v529
  %1395 = vmatprep.subr.bf16.mxu0 0
  %1396 = vmatpush2.bf16.msra.mxu0 0
  %1397 = vmatprep.subr.bf16.mxu0 0
  %1398 = vmatpush2.bf16.msra.mxu0 0
  %1399 = vmatprep.subr.bf16.mxu0 0
  %1400 = vmatpush2.bf16.msra.mxu0 0
  %1401 = vmatprep.subr.bf16.mxu0 0
  %1402 = vmatpush2.bf16.msra.mxu0 0
  %1403 = vmatprep.subr.bf16.mxu0 0
  %1404 = vmatpush2.bf16.msra.mxu0 0
  %1405 = vmatprep.subr.bf16.mxu0 0
  %1406 = vmatpush2.bf16.msra.mxu0 0
  %1407 = vmatprep.subr.bf16.mxu0 0
  %1408 = vmatpush2.bf16.msra.mxu0 0
  %1409 = vmatprep.subr.bf16.mxu0 0
  %1410 = vmatpush2.bf16.msra.mxu0 0
  %1411 = vmatprep.mubr.bf16.mxu0 0
  %1412 = vmatmul.mubr.bf16.gmra.mxu0 %v1337
  %v1413 = vpop.f32.mrf.mxu0
  %v1414 = vadd.f32 %v437, %v1413
  %v1415 = vpop.f32.mrf.mxu0
  %v1416 = vpop.f32.mrf.mxu0
  %v1417 = vpop.f32.mrf.mxu0
  %1418 = vdwg.mxu0
  %v1419 = vadd.f32 %v1334, %v1373
  %v1420 = vxor.u32 %v1419, 2147483648
  %v1421 = vmul.f32 %v1420, 1.442695
  %v1422 = vpow.pop %v1421
  %v1423 = vadd.f32 %v1422, 1.0
  %v1424 = vrcp.pop %v1423
  %v1425 = vmul.f32 1.0, %v1424
  %v1426 = vadd.f32 %v1335, %v1375
  %v1427 = vxor.u32 %v1426, 2147483648
  %v1428 = vmul.f32 %v1427, 1.442695
  %v1429 = vpow.pop %v1428
  %v1430 = vadd.f32 %v1429, 1.0
  %v1431 = vrcp.pop %v1430
  %v1432 = vmul.f32 1.0, %v1431
  %v1433 = vmul.f32 %v1425, %v1414
  %v1434 = vadd.f32 %v1336, %v1433
  %v1435 = vtanh.pop %v1434
  %v1436 = vsub.f32 1.0, %v1432
  %v1437 = vmul.f32 %v1436, %v1435
  %v1438 = vmul.f32 %v1432, %v1330
  %v1439 = vadd.f32 %v1437, %v1438
  %1440 = vst [vmem:[%s5] sm:$0xff] %v1439
  // Predicated region
  $region22: #{gru_last_output.1} parent=0 // pred_check
    _
  $region23: #{gru_last_output.1} parent=0 // pred_check_branch
    %1442 = sbr.rel (0) target = $region25
  $region24: #{gru_last_output.1} parent=0 // pred_region
    _
  $region25: #{gru_last_output.1} parent=0 // pred_fallthru
    _
  // Predicated region
  $region26: #{gru_last_output.1} parent=0 // pred_check
    _
  $region27: #{gru_last_output.1} parent=0 // pred_check_branch
    %1444 = sbr.rel (0) target = $region29
  $region28: #{gru_last_output.1} parent=0 // pred_region
    _
  $region29: #{gru_last_output.1} parent=0 // pred_fallthru
    _

</llo_original>
